<compile_context>
chip_gen: v6e
topology: v6e:2x2x1
jax: 0.10.0
libtpu: 0.0.40
codegen_flags: <defaults>
</compile_context>

<pallas_src>
import jax
import jax.numpy as jnp
import numpy as np
from jax import lax
from jax.experimental import pallas as pl
from jax.experimental.pallas import tpu as pltpu  # noqa: F401  (TPU backend import)

N_HOPS = 3
_LANE = 128


def _round_up(x, m):
    return ((x + m - 1) // m) * m


# ---------------------------------------------------------------------------
# Pallas kernel: attention hops + option scoring + softmax
# ---------------------------------------------------------------------------
def _attn_reader_kernel(ctx_ref, story_ref, mask_ref, wt_ref, b_ref,
                        opt_t_ref, omask_ref, out_ref):
    ctx = ctx_ref[...]          # [1, Dp]
    story = story_ref[...]      # [Tp, Dp]
    maskc = mask_ref[...]       # [Tp, 1]
    Wt = wt_ref[...]            # [Dp, Dp]  (= W^T)
    b = b_ref[...]              # [1, Dp]
    opt_t = opt_t_ref[...]      # [Dp, Op]  (= options^T)
    omask = omask_ref[...]      # [1, Op]

    neg_inf = jnp.float32(-1e30)
    tiny = jnp.float32(1e-30)

    # ---- hoisted precompute: the only matmul feeding the hop chain ----------
    # SW[t, i] = sum_j story[t, j] * W[i, j]   (== story @ W^T)
    SW = jnp.dot(story, Wt, preferred_element_type=jnp.float32)      # [Tp, Dp]
    bs = jnp.sum(story * b, axis=-1, keepdims=True)                  # [Tp, 1]

    # ---- hop loop: VPU broadcast-mul + XLU reduces only (no MXU) -----------
    for _ in range(N_HOPS):     # static, unrolled
        # score_t = (ctx @ W + b) . story_t
        scores = jnp.sum(ctx * SW, axis=-1, keepdims=True) + bs      # [Tp, 1]
        scores = jnp.where(maskc > 0, scores, neg_inf)
        m = jnp.max(scores, axis=0, keepdims=True)                   # [1, 1]
        e = jnp.exp(scores - m) * maskc                              # [Tp, 1]
        denom = jnp.maximum(jnp.sum(e, axis=0, keepdims=True), tiny)
        weights = e * pl.reciprocal(denom, approx=True)              # [Tp, 1]
        ctx = ctx + jnp.sum(weights * story, axis=0, keepdims=True)  # [1, Dp]

    # ---- option scoring + softmax (lane-dense [1, Op] output) ---------------
    opt_scores = jnp.dot(ctx, opt_t, preferred_element_type=jnp.float32)  # [1, Op]
    opt_scores = jnp.where(omask > 0, opt_scores, neg_inf)
    m2 = jnp.max(opt_scores, axis=-1, keepdims=True)
    e2 = jnp.exp(opt_scores - m2) * omask
    d2 = jnp.maximum(jnp.sum(e2, axis=-1, keepdims=True), tiny)
    out_ref[...] = e2 * pl.reciprocal(d2, approx=True)


def _full_spec(shape):
    return pl.BlockSpec(shape, lambda: (0,) * len(shape))


def attn_hops_pallas(ctx, story, mask, W, b, opts):
    """ctx [1,D], story [T,D], mask [T], W [D,D], b [1,D], opts [O,D] -> [1,O]."""
    T, D = story.shape
    O = opts.shape[0]
    Dp = _round_up(D, _LANE)
    Tp = _round_up(T, _LANE)
    Op = _round_up(O, _LANE)
    f32 = jnp.float32

    # Pad everything to lane/vreg-friendly shapes (padded lanes/rows are zero;
    # padded story rows get mask 0, padded option columns get omask 0).
    ctx_p = jnp.zeros((1, Dp), f32).at[:, :D].set(ctx.astype(f32))
    story_p = jnp.zeros((Tp, Dp), f32).at[:T, :D].set(story.astype(f32))
    mask_p = jnp.zeros((Tp, 1), f32).at[:T, 0].set(mask.astype(f32))
    wt_p = jnp.zeros((Dp, Dp), f32).at[:D, :D].set(W.T.astype(f32))
    b_p = jnp.zeros((1, Dp), f32).at[:, :D].set(b.astype(f32))
    opt_t_p = jnp.zeros((Dp, Op), f32).at[:D, :O].set(opts.T.astype(f32))
    omask_p = jnp.zeros((1, Op), f32).at[:, :O].set(1.0)

    args = (ctx_p, story_p, mask_p, wt_p, b_p, opt_t_p, omask_p)
    out_shape = jax.ShapeDtypeStruct((1, Op), f32)
    out = pl.pallas_call(
        _attn_reader_kernel,
        out_shape=out_shape,
        in_specs=[_full_spec(a.shape) for a in args],
        out_specs=_full_spec(out_shape.shape),
    )(*args)
    return out[:, :O]


# ---------------------------------------------------------------------------
# Plain-JAX glue: batched bidirectional GRU "BiEncoder"
# ---------------------------------------------------------------------------
def _gru_cell(params, x, h):
    # x: [B, E], h: [B, H]
    Wi, Wh, bi, bh = params
    gi = x @ Wi + bi
    gh = h @ Wh + bh
    i_r, i_z, i_n = jnp.split(gi, 3, axis=-1)
    h_r, h_z, h_n = jnp.split(gh, 3, axis=-1)
    r = jax.nn.sigmoid(i_r + h_r)
    z = jax.nn.sigmoid(i_z + h_z)
    n = jnp.tanh(i_n + r * h_n)
    return (1.0 - z) * n + z * h


def _run_gru(params, x, lengths, reverse):
    # x: [B, T, E], lengths: [B]
    B, T, _ = x.shape
    H = params[1].shape[0]
    xs = jnp.swapaxes(x, 0, 1)              # [T, B, E]
    idxs = jnp.arange(T)
    if reverse:
        xs = xs[::-1]
        idxs = idxs[::-1]

    def step(h, inp):
        t, x_t = inp
        h_new = _gru_cell(params, x_t, h)
        valid = (t < lengths)[:, None]       # [B, 1]
        h = jnp.where(valid, h_new, h)
        out_t = jnp.where(valid, h_new, jnp.zeros_like(h_new))
        return h, out_t

    h_final, outs = lax.scan(step, jnp.zeros((B, H), x.dtype), (idxs, xs))
    outs = jnp.swapaxes(outs, 0, 1)          # [B, T, H]
    if reverse:
        outs = outs[:, ::-1, :]
    return h_final, outs


def bi_encoder_batched(p_fwd, p_bwd, x, lengths):
    h_f, out_f = _run_gru(p_fwd, x, lengths, reverse=False)
    h_b, out_b = _run_gru(p_bwd, x, lengths, reverse=True)
    feat = jnp.concatenate([h_f, h_b], axis=-1)          # [B, 2H]
    outputs = jnp.concatenate([out_f, out_b], axis=-1)   # [B, T, 2H]
    return feat, outputs


def _init_gru(key, E, H):
    k1, k2, k3, k4 = jax.random.split(key, 4)
    return (jax.random.normal(k1, (E, 3 * H), jnp.float32) * 0.1,
            jax.random.normal(k2, (H, 3 * H), jnp.float32) * 0.1,
            jax.random.normal(k3, (3 * H,), jnp.float32) * 0.1,
            jax.random.normal(k4, (3 * H,), jnp.float32) * 0.1)


def init_params(key, embed_dim):
    D = embed_dim * 2
    ks = jax.random.split(key, 6)
    return {
        "qa_f": _init_gru(ks[0], embed_dim, embed_dim),
        "qa_b": _init_gru(ks[1], embed_dim, embed_dim),
        "st_f": _init_gru(ks[2], embed_dim, embed_dim),
        "st_b": _init_gru(ks[3], embed_dim, embed_dim),
        "W_attn": jax.random.normal(ks[4], (D, D), jnp.float32) * 0.1,
        "b_attn": jax.random.normal(ks[5], (D,), jnp.float32) * 0.1,
    }


# ---------------------------------------------------------------------------
# Full AttnReader forward
# ---------------------------------------------------------------------------
def _encode(params, story, story_len, query, query_len, options, options_len):
    """Batched BiEncoder pass: query + all options in ONE scan; story separately."""
    E = query.shape[-1]
    seqs = [query] + list(options)
    lens = [query_len] + list(options_len)
    Tmax = max(int(s.shape[0]) for s in seqs)
    x = jnp.stack([
        jnp.zeros((Tmax, E), query.dtype).at[:s.shape[0], :].set(s) for s in seqs
    ])                                                       # [1+O, Tmax, E]
    lengths = jnp.stack([jnp.asarray(l, jnp.int32) for l in lens])
    feats, _ = bi_encoder_batched(params["qa_f"], params["qa_b"], x, lengths)
    q_feat, opt_feats = feats[0], feats[1:]                  # [D], [O, D]

    _, st_out = bi_encoder_batched(
        params["st_f"], params["st_b"], story[None, :, :],
        jnp.asarray(story_len, jnp.int32)[None])
    story_outputs = st_out[0]                                # [T, D]
    mask = (jnp.arange(story.shape[0]) < story_len).astype(jnp.float32)  # [T]
    return q_feat[None, :], story_outputs, mask, opt_feats


def attn_reader_forward(params, story, story_len, query, query_len,
                        options, options_len):
    ctx0, story_outputs, mask, opt_feats = _encode(
        params, story, story_len, query, query_len, options, options_len)
    return attn_hops_pallas(ctx0, story_outputs, mask,
                            params["W_attn"], params["b_attn"][None, :],
                            opt_feats)                       # [1, n_options]


# pure-JAX reference of the kernel portion (correctness check)
def _hops_ref(ctx, story, mask, W, b, opts):
    for _ in range(N_HOPS):
        proj = ctx @ W + b
        scores = proj @ story.T
        scores = jnp.where(mask[None, :] > 0, scores, -jnp.inf)
        weights = jax.nn.softmax(scores, axis=-1)
        ctx = ctx + weights @ story
    return jax.nn.softmax(ctx @ opts.T, axis=-1)


if __name__ == "__main__":
    key = jax.random.PRNGKey(0)
    embed_dim = 32
    T_story, T_query, T_opt, n_options = 16, 8, 6, 4

    kp, k1, k2, k3 = jax.random.split(key, 4)
    params = init_params(kp, embed_dim)

    story = jax.random.normal(k1, (T_story, embed_dim), jnp.float32)
    query = jax.random.normal(k2, (T_query, embed_dim), jnp.float32)
    opt_keys = jax.random.split(k3, n_options)
    options = [jax.random.normal(k, (T_opt, embed_dim), jnp.float32)
               for k in opt_keys]

    story_len = jnp.int32(13)
    query_len = jnp.int32(7)
    options_len = [jnp.int32(l) for l in (5, 6, 4, 6)]

    probs = jax.jit(attn_reader_forward)(
        params, story, story_len, query, query_len, options, options_len)
    probs = jax.block_until_ready(probs)

    # verify the Pallas kernel against a pure-JAX reference of the same math
    ctx0, story_outputs, mask, opt_feats = _encode(
        params, story, story_len, query, query_len, options, options_len)
    ref = _hops_ref(ctx0, story_outputs, mask,
                    params["W_attn"], params["b_attn"][None, :], opt_feats)

    assert probs.shape == (1, n_options)
    # tolerances account for the approx (EUP vrcp) reciprocals in both softmaxes
    assert np.allclose(np.asarray(probs), np.asarray(ref), rtol=1e-2, atol=1e-3)
    assert np.isclose(float(np.asarray(probs).sum()), 1.0, atol=1e-2)
    print("KERNEL_OK")
</pallas_src>

<mosaic_0001>
module attributes {stable_mosaic.version = 11 : i64} {
  func.func @_attn_reader_kernel(%arg0: memref<1x128xf32, #tpu.memory_space<vmem>>, %arg1: memref<128x128xf32, #tpu.memory_space<vmem>>, %arg2: memref<128x1xf32, #tpu.memory_space<vmem>>, %arg3: memref<128x128xf32, #tpu.memory_space<vmem>>, %arg4: memref<1x128xf32, #tpu.memory_space<vmem>>, %arg5: memref<128x128xf32, #tpu.memory_space<vmem>>, %arg6: memref<1x128xf32, #tpu.memory_space<vmem>>, %arg7: memref<1x128xf32, #tpu.memory_space<vmem>>) attributes {dimension_semantics = [], scalar_prefetch = 0 : i64, scratch_operands = 0 : i64, tpu.core_type = #tpu.core_type<tc>} {
    %c0 = arith.constant 0 : index
    %c0_0 = arith.constant 0 : index
    %0 = vector.load %arg0[%c0, %c0_0] : memref<1x128xf32, #tpu.memory_space<vmem>>, vector<1x128xf32>
    %c0_1 = arith.constant 0 : index
    %c0_2 = arith.constant 0 : index
    %1 = vector.load %arg1[%c0_1, %c0_2] : memref<128x128xf32, #tpu.memory_space<vmem>>, vector<128x128xf32>
    %c0_3 = arith.constant 0 : index
    %c0_4 = arith.constant 0 : index
    %2 = vector.load %arg2[%c0_3, %c0_4] : memref<128x1xf32, #tpu.memory_space<vmem>>, vector<128x1xf32>
    %c0_5 = arith.constant 0 : index
    %c0_6 = arith.constant 0 : index
    %3 = vector.load %arg3[%c0_5, %c0_6] : memref<128x128xf32, #tpu.memory_space<vmem>>, vector<128x128xf32>
    %c0_7 = arith.constant 0 : index
    %c0_8 = arith.constant 0 : index
    %4 = vector.load %arg4[%c0_7, %c0_8] : memref<1x128xf32, #tpu.memory_space<vmem>>, vector<1x128xf32>
    %c0_9 = arith.constant 0 : index
    %c0_10 = arith.constant 0 : index
    %5 = vector.load %arg5[%c0_9, %c0_10] : memref<128x128xf32, #tpu.memory_space<vmem>>, vector<128x128xf32>
    %c0_11 = arith.constant 0 : index
    %c0_12 = arith.constant 0 : index
    %6 = vector.load %arg6[%c0_11, %c0_12] : memref<1x128xf32, #tpu.memory_space<vmem>>, vector<1x128xf32>
    %cst = arith.constant dense<0.000000e+00> : vector<128x128xf32>
    %7 = tpu.matmul %1, %3, %cst {dimension_numbers = #tpu.dot_dimension_numbers<[1], [0], [0], [1], [0, 0, 1, 1], [], []>} : vector<128x128xf32>, vector<128x128xf32>, vector<128x128xf32> -> vector<128x128xf32>
    %8 = vector.broadcast %4 : vector<1x128xf32> to vector<128x128xf32>
    %9 = arith.mulf %1, %8 : vector<128x128xf32>
    %cst_13 = arith.constant dense<0.000000e+00> : vector<128xf32>
    %10 = vector.multi_reduction <add>, %9, %cst_13 [1] : vector<128x128xf32> to vector<128xf32>
    %11 = vector.shape_cast %10 : vector<128xf32> to vector<128x1xf32>
    %12 = vector.broadcast %0 : vector<1x128xf32> to vector<128x128xf32>
    %13 = arith.mulf %12, %7 : vector<128x128xf32>
    %cst_14 = arith.constant dense<0.000000e+00> : vector<128xf32>
    %14 = vector.multi_reduction <add>, %13, %cst_14 [1] : vector<128x128xf32> to vector<128xf32>
    %15 = vector.shape_cast %14 : vector<128xf32> to vector<128x1xf32>
    %16 = arith.addf %15, %11 : vector<128x1xf32>
    %cst_15 = arith.constant 0.000000e+00 : f32
    %17 = vector.broadcast %cst_15 : f32 to vector<128x1xf32>
    %18 = arith.cmpf ogt, %2, %17 : vector<128x1xf32>
    %cst_16 = arith.constant -1.000000e+30 : f32
    %19 = vector.broadcast %cst_16 : f32 to vector<128x1xf32>
    %20 = arith.select %18, %16, %19 : vector<128x1xi1>, vector<128x1xf32>
    %cst_17 = arith.constant dense<0xFF800000> : vector<1xf32>
    %21 = vector.multi_reduction <maximumf>, %20, %cst_17 [0] : vector<128x1xf32> to vector<1xf32>
    %22 = vector.shape_cast %21 : vector<1xf32> to vector<1x1xf32>
    %23 = vector.broadcast %22 : vector<1x1xf32> to vector<128x1xf32>
    %24 = arith.subf %20, %23 : vector<128x1xf32>
    %25 = math.exp %24 : vector<128x1xf32>
    %26 = arith.mulf %25, %2 : vector<128x1xf32>
    %cst_18 = arith.constant dense<0.000000e+00> : vector<1xf32>
    %27 = vector.multi_reduction <add>, %26, %cst_18 [0] : vector<128x1xf32> to vector<1xf32>
    %28 = vector.shape_cast %27 : vector<1xf32> to vector<1x1xf32>
    %cst_19 = arith.constant 1.000000e-30 : f32
    %29 = vector.broadcast %cst_19 : f32 to vector<1x1xf32>
    %30 = arith.maximumf %28, %29 : vector<1x1xf32>
    %31 = tpu.reciprocal %30 {approx = true} : vector<1x1xf32> -> vector<1x1xf32>
    %32 = vector.broadcast %31 : vector<1x1xf32> to vector<128x1xf32>
    %33 = arith.mulf %26, %32 : vector<128x1xf32>
    %34 = vector.broadcast %33 : vector<128x1xf32> to vector<128x128xf32>
    %35 = arith.mulf %34, %1 : vector<128x128xf32>
    %cst_20 = arith.constant dense<0.000000e+00> : vector<128xf32>
    %36 = vector.multi_reduction <add>, %35, %cst_20 [0] : vector<128x128xf32> to vector<128xf32>
    %37 = vector.shape_cast %36 : vector<128xf32> to vector<1x128xf32>
    %38 = arith.addf %0, %37 : vector<1x128xf32>
    %39 = vector.broadcast %38 : vector<1x128xf32> to vector<128x128xf32>
    %40 = arith.mulf %39, %7 : vector<128x128xf32>
    %cst_21 = arith.constant dense<0.000000e+00> : vector<128xf32>
    %41 = vector.multi_reduction <add>, %40, %cst_21 [1] : vector<128x128xf32> to vector<128xf32>
    %42 = vector.shape_cast %41 : vector<128xf32> to vector<128x1xf32>
    %43 = arith.addf %42, %11 : vector<128x1xf32>
    %cst_22 = arith.constant 0.000000e+00 : f32
    %44 = vector.broadcast %cst_22 : f32 to vector<128x1xf32>
    %45 = arith.cmpf ogt, %2, %44 : vector<128x1xf32>
    %cst_23 = arith.constant -1.000000e+30 : f32
    %46 = vector.broadcast %cst_23 : f32 to vector<128x1xf32>
    %47 = arith.select %45, %43, %46 : vector<128x1xi1>, vector<128x1xf32>
    %cst_24 = arith.constant dense<0xFF800000> : vector<1xf32>
    %48 = vector.multi_reduction <maximumf>, %47, %cst_24 [0] : vector<128x1xf32> to vector<1xf32>
    %49 = vector.shape_cast %48 : vector<1xf32> to vector<1x1xf32>
    %50 = vector.broadcast %49 : vector<1x1xf32> to vector<128x1xf32>
    %51 = arith.subf %47, %50 : vector<128x1xf32>
    %52 = math.exp %51 : vector<128x1xf32>
    %53 = arith.mulf %52, %2 : vector<128x1xf32>
    %cst_25 = arith.constant dense<0.000000e+00> : vector<1xf32>
    %54 = vector.multi_reduction <add>, %53, %cst_25 [0] : vector<128x1xf32> to vector<1xf32>
    %55 = vector.shape_cast %54 : vector<1xf32> to vector<1x1xf32>
    %cst_26 = arith.constant 1.000000e-30 : f32
    %56 = vector.broadcast %cst_26 : f32 to vector<1x1xf32>
    %57 = arith.maximumf %55, %56 : vector<1x1xf32>
    %58 = tpu.reciprocal %57 {approx = true} : vector<1x1xf32> -> vector<1x1xf32>
    %59 = vector.broadcast %58 : vector<1x1xf32> to vector<128x1xf32>
    %60 = arith.mulf %53, %59 : vector<128x1xf32>
    %61 = vector.broadcast %60 : vector<128x1xf32> to vector<128x128xf32>
    %62 = arith.mulf %61, %1 : vector<128x128xf32>
    %cst_27 = arith.constant dense<0.000000e+00> : vector<128xf32>
    %63 = vector.multi_reduction <add>, %62, %cst_27 [0] : vector<128x128xf32> to vector<128xf32>
    %64 = vector.shape_cast %63 : vector<128xf32> to vector<1x128xf32>
    %65 = arith.addf %38, %64 : vector<1x128xf32>
    %66 = vector.broadcast %65 : vector<1x128xf32> to vector<128x128xf32>
    %67 = arith.mulf %66, %7 : vector<128x128xf32>
    %cst_28 = arith.constant dense<0.000000e+00> : vector<128xf32>
    %68 = vector.multi_reduction <add>, %67, %cst_28 [1] : vector<128x128xf32> to vector<128xf32>
    %69 = vector.shape_cast %68 : vector<128xf32> to vector<128x1xf32>
    %70 = arith.addf %69, %11 : vector<128x1xf32>
    %cst_29 = arith.constant 0.000000e+00 : f32
    %71 = vector.broadcast %cst_29 : f32 to vector<128x1xf32>
    %72 = arith.cmpf ogt, %2, %71 : vector<128x1xf32>
    %cst_30 = arith.constant -1.000000e+30 : f32
    %73 = vector.broadcast %cst_30 : f32 to vector<128x1xf32>
    %74 = arith.select %72, %70, %73 : vector<128x1xi1>, vector<128x1xf32>
    %cst_31 = arith.constant dense<0xFF800000> : vector<1xf32>
    %75 = vector.multi_reduction <maximumf>, %74, %cst_31 [0] : vector<128x1xf32> to vector<1xf32>
    %76 = vector.shape_cast %75 : vector<1xf32> to vector<1x1xf32>
    %77 = vector.broadcast %76 : vector<1x1xf32> to vector<128x1xf32>
    %78 = arith.subf %74, %77 : vector<128x1xf32>
    %79 = math.exp %78 : vector<128x1xf32>
    %80 = arith.mulf %79, %2 : vector<128x1xf32>
    %cst_32 = arith.constant dense<0.000000e+00> : vector<1xf32>
    %81 = vector.multi_reduction <add>, %80, %cst_32 [0] : vector<128x1xf32> to vector<1xf32>
    %82 = vector.shape_cast %81 : vector<1xf32> to vector<1x1xf32>
    %cst_33 = arith.constant 1.000000e-30 : f32
    %83 = vector.broadcast %cst_33 : f32 to vector<1x1xf32>
    %84 = arith.maximumf %82, %83 : vector<1x1xf32>
    %85 = tpu.reciprocal %84 {approx = true} : vector<1x1xf32> -> vector<1x1xf32>
    %86 = vector.broadcast %85 : vector<1x1xf32> to vector<128x1xf32>
    %87 = arith.mulf %80, %86 : vector<128x1xf32>
    %88 = vector.broadcast %87 : vector<128x1xf32> to vector<128x128xf32>
    %89 = arith.mulf %88, %1 : vector<128x128xf32>
    %cst_34 = arith.constant dense<0.000000e+00> : vector<128xf32>
    %90 = vector.multi_reduction <add>, %89, %cst_34 [0] : vector<128x128xf32> to vector<128xf32>
    %91 = vector.shape_cast %90 : vector<128xf32> to vector<1x128xf32>
    %92 = arith.addf %65, %91 : vector<1x128xf32>
    %cst_35 = arith.constant dense<0.000000e+00> : vector<1x128xf32>
    %93 = tpu.matmul %92, %5, %cst_35 {dimension_numbers = #tpu.dot_dimension_numbers<[1], [0], [0], [1], [0, 0, 1, 1], [], []>} : vector<1x128xf32>, vector<128x128xf32>, vector<1x128xf32> -> vector<1x128xf32>
    %cst_36 = arith.constant 0.000000e+00 : f32
    %94 = vector.broadcast %cst_36 : f32 to vector<1x128xf32>
    %95 = arith.cmpf ogt, %6, %94 : vector<1x128xf32>
    %cst_37 = arith.constant -1.000000e+30 : f32
    %96 = vector.broadcast %cst_37 : f32 to vector<1x128xf32>
    %97 = arith.select %95, %93, %96 : vector<1x128xi1>, vector<1x128xf32>
    %cst_38 = arith.constant dense<0xFF800000> : vector<1xf32>
    %98 = vector.multi_reduction <maximumf>, %97, %cst_38 [1] : vector<1x128xf32> to vector<1xf32>
    %99 = vector.shape_cast %98 : vector<1xf32> to vector<1x1xf32>
    %100 = vector.broadcast %99 : vector<1x1xf32> to vector<1x128xf32>
    %101 = arith.subf %97, %100 : vector<1x128xf32>
    %102 = math.exp %101 : vector<1x128xf32>
    %103 = arith.mulf %102, %6 : vector<1x128xf32>
    %cst_39 = arith.constant dense<0.000000e+00> : vector<1xf32>
    %104 = vector.multi_reduction <add>, %103, %cst_39 [1] : vector<1x128xf32> to vector<1xf32>
    %105 = vector.shape_cast %104 : vector<1xf32> to vector<1x1xf32>
    %cst_40 = arith.constant 1.000000e-30 : f32
    %106 = vector.broadcast %cst_40 : f32 to vector<1x1xf32>
    %107 = arith.maximumf %105, %106 : vector<1x1xf32>
    %108 = tpu.reciprocal %107 {approx = true} : vector<1x1xf32> -> vector<1x1xf32>
    %109 = vector.broadcast %108 : vector<1x1xf32> to vector<1x128xf32>
    %110 = arith.mulf %103, %109 : vector<1x128xf32>
    %c0_41 = arith.constant 0 : index
    %c0_42 = arith.constant 0 : index
    %111 = vector.load %arg7[%c0_41, %c0_42] : memref<1x128xf32, #tpu.memory_space<vmem>>, vector<1x128xf32>
    tpu.vector_store %arg7[%c0_41, %c0_42], %110 {strides = array<i32>} : memref<1x128xf32, #tpu.memory_space<vmem>>, vector<1x128xf32>,
    return
  }
}

</mosaic_0001>

<llo_original>
// kernel: custom-call.1
$region0: #{custom-call.1}
  %s0 = inlined_call_operand.vmem [shape: f32[5,32], index: 0, kind: output, shape index: {}]

// kernel: reverse
$region0: #{reverse}
  %s0 = inlined_call_operand.vmem [shape: f32[16,32], index: 0, kind: input, shape index: {}]
  %s1 = inlined_call_operand.vmem [shape: f32[16,32], index: 1, kind: output, shape index: {}]
  $region1: #{reverse} parent=0
    #allocation0 [shape = 'u8[8192]{0}', space=vmem, size = 0x2000, scoped, tag = 'operand span for operand 0']
    #allocation1 [shape = 'u8[8192]{0}', space=vmem, size = 0x2000, scoped, tag = 'operand span for operand 1']
    // Predicated region
    $region2: #{reverse} parent=1 // pred_check
      _
    $region3: #{reverse} parent=1 // pred_check_branch
      %3 = sbr.rel (0) target = $region5
    $region4: #{reverse} parent=1 // pred_region
      // Predicated region
      $region6: #{reverse} parent=4 // pred_check
        _
      $region7: #{reverse} parent=4 // pred_check_branch
        %5 = sbr.rel (0) target = $region9
      $region8: #{reverse} parent=4 // pred_region
        // Predicated region
        $region21: #{reverse} parent=8 // pred_check
          _
        $region22: #{reverse} parent=8 // pred_check_branch
          %23 = sbr.rel (0) target = $region24
        $region23: #{reverse} parent=8 // pred_region
          loop: start=0, step=1, limit=1
          $region25: #{reverse} parent=23 // loop_pre_header
            _
          $region26: #{reverse} parent=23 // loop_header
            %s25 = sphi 0, %s29
            %p26 = scmp.ge.s32.totalorder %s25, 1
            %s30 = sphi %s0, %s0
            %s31 = sphi [#allocation0], [#allocation0]
          $region27: #{reverse} parent=23 // loop_header_branch
            %28 = sbr.rel (%p26) target = $region31
          $region28: #{reverse} parent=23 // loop_body
            %v32 = vld [vmem:[%s30] sm:$0xff]
            %33 = vst [vmem:[%s31] sm:$0xff] %v32
            %v34 = vld [vmem:[%s30 + $0x8] sm:$0xff]
            %35 = vst [vmem:[%s31 + $0x8] sm:$0xff] %v34
          $region29: #{reverse} parent=23 // loop_footer
            %s29 = sadd.s32 1, %s25
          $region30: #{reverse} parent=23 // loop_footer_branch
            %24 = sbr.rel target = $region26
          $region31: #{reverse} parent=23 // loop_exit
            _
        $region24: #{reverse} parent=8 // pred_fallthru
          _
        // Predicated region
        $region32: #{reverse} parent=8 // pred_check
          _
        $region33: #{reverse} parent=8 // pred_check_branch
          %37 = sbr.rel target = $region35
        $region34: #{reverse} parent=8 // pred_region
          _
        $region35: #{reverse} parent=8 // pred_fallthru
          _
      $region9: #{reverse} parent=4 // pred_fallthru
        _
      // Predicated region
      $region10: #{reverse} parent=4 // pred_check
        _
      $region11: #{reverse} parent=4 // pred_check_branch
        %7 = sbr.rel target = $region13
      $region12: #{reverse} parent=4 // pred_region
        %s9 = ssub.s32 256, 1
        loop: start=0, step=1, limit=1
        $region14: #{reverse} parent=12 // loop_pre_header
          _
        $region15: #{reverse} parent=12 // loop_header
          %s11 = sphi 0, %s15
          %p12 = scmp.ge.s32.totalorder %s11, 1
          %s16 = sphi %s0, %s0
          %s17 = sphi [#allocation0], [#allocation0]
        $region16: #{reverse} parent=12 // loop_header_branch
          %14 = sbr.rel (%p12) target = $region20
        $region17: #{reverse} parent=12 // loop_body
          %v18 = vld [vmem:[%s16] sm:%s9]
          %19 = vst [vmem:[%s17] sm:%s9] %v18
          %v20 = vld [vmem:[%s16 + $0x8] sm:%s9]
          %21 = vst [vmem:[%s17 + $0x8] sm:%s9] %v20
        $region18: #{reverse} parent=12 // loop_footer
          %s15 = sadd.s32 1, %s11
        $region19: #{reverse} parent=12 // loop_footer_branch
          %10 = sbr.rel target = $region15
        $region20: #{reverse} parent=12 // loop_exit
          _
      $region13: #{reverse} parent=4 // pred_fallthru
        _
    $region5: #{reverse} parent=1 // pred_fallthru
      _
    %38 = vnop
    %s39 = scalar_lea.vmem [#allocation0], 8
    %s40 = scalar_lea.vmem %s39, 7 [#allocation0]
    %v41 = vld [vmem:[%s40] ss:$-1 sm:$0xff]
    %42 = vst [vmem:[#allocation1] sm:$0xff] %v41
    %s43 = scalar_lea.vmem [#allocation1], 8
    %s44 = scalar_lea.vmem [#allocation0], 7
    %v45 = vld [vmem:[%s44] ss:$-1 sm:$0xff]
    %46 = vst [vmem:[%s43] sm:$0xff] %v45
    // Predicated region
    $region36: #{reverse} parent=1 // pred_check
      _
    $region37: #{reverse} parent=1 // pred_check_branch
      %48 = sbr.rel (0) target = $region39
    $region38: #{reverse} parent=1 // pred_region
      // Predicated region
      $region40: #{reverse} parent=38 // pred_check
        _
      $region41: #{reverse} parent=38 // pred_check_branch
        %50 = sbr.rel (0) target = $region43
      $region42: #{reverse} parent=38 // pred_region
        // Predicated region
        $region55: #{reverse} parent=42 // pred_check
          _
        $region56: #{reverse} parent=42 // pred_check_branch
          %68 = sbr.rel (0) target = $region58
        $region57: #{reverse} parent=42 // pred_region
          loop: start=0, step=1, limit=1
          $region59: #{reverse} parent=57 // loop_pre_header
            _
          $region60: #{reverse} parent=57 // loop_header
            %s70 = sphi 0, %s74
            %p71 = scmp.ge.s32.totalorder %s70, 1
            %s75 = sphi [#allocation1], [#allocation1]
            %s76 = sphi %s1, %s1
          $region61: #{reverse} parent=57 // loop_header_branch
            %73 = sbr.rel (%p71) target = $region65
          $region62: #{reverse} parent=57 // loop_body
            %v77 = vld [vmem:[%s75] sm:$0xff]
            %78 = vst [vmem:[%s76] sm:$0xff] %v77
            %v79 = vld [vmem:[%s75 + $0x8] sm:$0xff]
            %80 = vst [vmem:[%s76 + $0x8] sm:$0xff] %v79
          $region63: #{reverse} parent=57 // loop_footer
            %s74 = sadd.s32 1, %s70
          $region64: #{reverse} parent=57 // loop_footer_branch
            %69 = sbr.rel target = $region60
          $region65: #{reverse} parent=57 // loop_exit
            _
        $region58: #{reverse} parent=42 // pred_fallthru
          _
        // Predicated region
        $region66: #{reverse} parent=42 // pred_check
          _
        $region67: #{reverse} parent=42 // pred_check_branch
          %82 = sbr.rel target = $region69
        $region68: #{reverse} parent=42 // pred_region
          _
        $region69: #{reverse} parent=42 // pred_fallthru
          _
      $region43: #{reverse} parent=38 // pred_fallthru
        _
      // Predicated region
      $region44: #{reverse} parent=38 // pred_check
        _
      $region45: #{reverse} parent=38 // pred_check_branch
        %52 = sbr.rel target = $region47
      $region46: #{reverse} parent=38 // pred_region
        %s54 = ssub.s32 256, 1
        loop: start=0, step=1, limit=1
        $region48: #{reverse} parent=46 // loop_pre_header
          _
        $region49: #{reverse} parent=46 // loop_header
          %s56 = sphi 0, %s60
          %p57 = scmp.ge.s32.totalorder %s56, 1
          %s61 = sphi [#allocation1], [#allocation1]
          %s62 = sphi %s1, %s1
        $region50: #{reverse} parent=46 // loop_header_branch
          %59 = sbr.rel (%p57) target = $region54
        $region51: #{reverse} parent=46 // loop_body
          %v63 = vld [vmem:[%s61] sm:%s54]
          %64 = vst [vmem:[%s62] sm:%s54] %v63
          %v65 = vld [vmem:[%s61 + $0x8] sm:%s54]
          %66 = vst [vmem:[%s62 + $0x8] sm:%s54] %v65
        $region52: #{reverse} parent=46 // loop_footer
          %s60 = sadd.s32 1, %s56
        $region53: #{reverse} parent=46 // loop_footer_branch
          %55 = sbr.rel target = $region49
        $region54: #{reverse} parent=46 // loop_exit
          _
      $region47: #{reverse} parent=38 // pred_fallthru
        _
    $region39: #{reverse} parent=1 // pred_fallthru
      _
    %83 = vnop

// kernel: custom-call.3
$region0: #{custom-call.3}
  %s0 = inlined_call_operand.vmem [shape: f32[1,32], index: 0, kind: output, shape index: {}]

// kernel: attn_reader_forward.1
$region0: #{attn_reader_forward.1}
  #allocation0 [shape = 'u32[]', space=smem, size = 0x4, offset = 0x4, fixed_abs, tag = 'smem constant byte address 0x4 - core index']
  #allocation1 [shape = 'u32[144,128]{1,0:T(1,128)}', space=vmem, size = 0x12000, scoped, tag = 'internal scratch']
  %s0 = inlined_call_operand.vmem [shape: f32[1,128], index: 0, kind: input, shape index: {}]
  %s1 = inlined_call_operand.vmem [shape: f32[128,128], index: 1, kind: input, shape index: {}]
  %s2 = inlined_call_operand.vmem [shape: f32[128,1], index: 2, kind: input, shape index: {}]
  %s3 = inlined_call_operand.vmem [shape: f32[128,128], index: 3, kind: input, shape index: {}]
  %s4 = inlined_call_operand.vmem [shape: f32[1,128], index: 4, kind: input, shape index: {}]
  %s5 = inlined_call_operand.vmem [shape: f32[128,128], index: 5, kind: input, shape index: {}]
  %s6 = inlined_call_operand.vmem [shape: f32[1,128], index: 6, kind: input, shape index: {}]
  %s7 = inlined_call_operand.hbm [shape: f32[1,128], index: 7, kind: output, shape index: {}]
  %s8 = sld [smem:[#allocation0]]
  $region38: #{attn_reader_forward.1} parent=0
    _
  %s10 = ssub.s32 1, %s8
  %s11 = scalar_select 0, %s10, %s8
  $region1: #{attn_reader_forward.1} parent=0
    #allocation2 [shape = 'u8[512]{0}', space=vmem, size = 0x400, scoped, tag = 'output window, operand 0, single buffered']
    #allocation3 [shape = 's32[1]{0}', space=sflag, size = 0x4, scoped, tag = 'scoped memory for attn_reader_forward.1']
    %12 = vsyncpa [#allocation3], 0
    // Predicated region
    $region2: #{attn_reader_forward.1} parent=1 // pred_check
      _
    $region3: #{attn_reader_forward.1} parent=1 // pred_check_branch
      %14 = sbr.rel (0) target = $region5
    $region4: #{attn_reader_forward.1} parent=1 // pred_region
      _
    $region5: #{attn_reader_forward.1} parent=1 // pred_fallthru
      _
    // Predicated region
    $region6: #{attn_reader_forward.1} parent=1 // pred_check
      _
    $region7: #{attn_reader_forward.1} parent=1 // pred_check_branch
      %16 = sbr.rel (0) target = $region9
    $region8: #{attn_reader_forward.1} parent=1 // pred_region
      _
    $region9: #{attn_reader_forward.1} parent=1 // pred_fallthru
      _
    // Predicated region
    $region10: #{attn_reader_forward.1} parent=1 // pred_check
      _
    $region11: #{attn_reader_forward.1} parent=1 // pred_check_branch
      %18 = sbr.rel (0) target = $region13
    $region12: #{attn_reader_forward.1} parent=1 // pred_region
      _
    $region13: #{attn_reader_forward.1} parent=1 // pred_fallthru
      _
    // Predicated region
    $region14: #{attn_reader_forward.1} parent=1 // pred_check
      _
    $region15: #{attn_reader_forward.1} parent=1 // pred_check_branch
      %20 = sbr.rel (0) target = $region17
    $region16: #{attn_reader_forward.1} parent=1 // pred_region
      _
    $region17: #{attn_reader_forward.1} parent=1 // pred_fallthru
      _
    // Predicated region
    $region18: #{attn_reader_forward.1} parent=1 // pred_check
      _
    $region19: #{attn_reader_forward.1} parent=1 // pred_check_branch
      %22 = sbr.rel (0) target = $region21
    $region20: #{attn_reader_forward.1} parent=1 // pred_region
      _
    $region21: #{attn_reader_forward.1} parent=1 // pred_fallthru
      _
    // Predicated region
    $region22: #{attn_reader_forward.1} parent=1 // pred_check
      _
    $region23: #{attn_reader_forward.1} parent=1 // pred_check_branch
      %24 = sbr.rel (0) target = $region25
    $region24: #{attn_reader_forward.1} parent=1 // pred_region
      _
    $region25: #{attn_reader_forward.1} parent=1 // pred_fallthru
      _
    // Predicated region
    $region26: #{attn_reader_forward.1} parent=1 // pred_check
      _
    $region27: #{attn_reader_forward.1} parent=1 // pred_check_branch
      %26 = sbr.rel (0) target = $region29
    $region28: #{attn_reader_forward.1} parent=1 // pred_region
      _
    $region29: #{attn_reader_forward.1} parent=1 // pred_fallthru
      _
    %v27 = vld [vmem:[%s0] sm:$0x1]
    %v28 = vld [vmem:[%s1] sm:$0xff]
    %v29 = vld [vmem:[%s1 + $0x8] sm:$0xff]
    %v30 = vld [vmem:[%s1 + $0x10] sm:$0xff]
    %v31 = vld [vmem:[%s1 + $0x18] sm:$0xff]
    %v32 = vld [vmem:[%s1 + $0x20] sm:$0xff]
    %v33 = vld [vmem:[%s1 + $0x28] sm:$0xff]
    %v34 = vld [vmem:[%s1 + $0x30] sm:$0xff]
    %v35 = vld [vmem:[%s1 + $0x38] sm:$0xff]
    %v36 = vld [vmem:[%s1 + $0x40] sm:$0xff]
    %v37 = vld [vmem:[%s1 + $0x48] sm:$0xff]
    %v38 = vld [vmem:[%s1 + $0x50] sm:$0xff]
    %v39 = vld [vmem:[%s1 + $0x58] sm:$0xff]
    %v40 = vld [vmem:[%s1 + $0x60] sm:$0xff]
    %v41 = vld [vmem:[%s1 + $0x68] sm:$0xff]
    %v42 = vld [vmem:[%s1 + $0x70] sm:$0xff]
    %v43 = vld [vmem:[%s1 + $0x78] sm:$0xff]
    %v44 = vld [vmem:[%s2] sm:$0xff]
    %v45 = vld [vmem:[%s2 + $0x8] sm:$0xff]
    %v46 = vld [vmem:[%s2 + $0x10] sm:$0xff]
    %v47 = vld [vmem:[%s2 + $0x18] sm:$0xff]
    %v48 = vld [vmem:[%s2 + $0x20] sm:$0xff]
    %v49 = vld [vmem:[%s2 + $0x28] sm:$0xff]
    %v50 = vld [vmem:[%s2 + $0x30] sm:$0xff]
    %v51 = vld [vmem:[%s2 + $0x38] sm:$0xff]
    %v52 = vld [vmem:[%s2 + $0x40] sm:$0xff]
    %v53 = vld [vmem:[%s2 + $0x48] sm:$0xff]
    %v54 = vld [vmem:[%s2 + $0x50] sm:$0xff]
    %v55 = vld [vmem:[%s2 + $0x58] sm:$0xff]
    %v56 = vld [vmem:[%s2 + $0x60] sm:$0xff]
    %v57 = vld [vmem:[%s2 + $0x68] sm:$0xff]
    %v58 = vld [vmem:[%s2 + $0x70] sm:$0xff]
    %v59 = vld [vmem:[%s2 + $0x78] sm:$0xff]
    %v60 = vld [vmem:[%s3] sm:$0xff]
    %v61 = vld [vmem:[%s3 + $0x8] sm:$0xff]
    %v62 = vld [vmem:[%s3 + $0x10] sm:$0xff]
    %v63 = vld [vmem:[%s3 + $0x18] sm:$0xff]
    %v64 = vld [vmem:[%s3 + $0x20] sm:$0xff]
    %v65 = vld [vmem:[%s3 + $0x28] sm:$0xff]
    %v66 = vld [vmem:[%s3 + $0x30] sm:$0xff]
    %v67 = vld [vmem:[%s3 + $0x38] sm:$0xff]
    %v68 = vld [vmem:[%s3 + $0x40] sm:$0xff]
    %v69 = vld [vmem:[%s3 + $0x48] sm:$0xff]
    %v70 = vld [vmem:[%s3 + $0x50] sm:$0xff]
    %v71 = vld [vmem:[%s3 + $0x58] sm:$0xff]
    %v72 = vld [vmem:[%s3 + $0x60] sm:$0xff]
    %v73 = vld [vmem:[%s3 + $0x68] sm:$0xff]
    %v74 = vld [vmem:[%s3 + $0x70] sm:$0xff]
    %v75 = vld [vmem:[%s3 + $0x78] sm:$0xff]
    %v76 = vld [vmem:[%s4] sm:$0x1]
    %v77 = vld [vmem:[%s5] sm:$0xff]
    %v78 = vld [vmem:[%s5 + $0x8] sm:$0xff]
    %v79 = vld [vmem:[%s5 + $0x10] sm:$0xff]
    %v80 = vld [vmem:[%s5 + $0x18] sm:$0xff]
    %v81 = vld [vmem:[%s5 + $0x20] sm:$0xff]
    %v82 = vld [vmem:[%s5 + $0x28] sm:$0xff]
    %v83 = vld [vmem:[%s5 + $0x30] sm:$0xff]
    %v84 = vld [vmem:[%s5 + $0x38] sm:$0xff]
    %v85 = vld [vmem:[%s5 + $0x40] sm:$0xff]
    %v86 = vld [vmem:[%s5 + $0x48] sm:$0xff]
    %v87 = vld [vmem:[%s5 + $0x50] sm:$0xff]
    %v88 = vld [vmem:[%s5 + $0x58] sm:$0xff]
    %v89 = vld [vmem:[%s5 + $0x60] sm:$0xff]
    %v90 = vld [vmem:[%s5 + $0x68] sm:$0xff]
    %v91 = vld [vmem:[%s5 + $0x70] sm:$0xff]
    %v92 = vld [vmem:[%s5 + $0x78] sm:$0xff]
    %v93 = vld [vmem:[%s6] sm:$0x1]
    %94 = vmatprep.subr.mxu0 0.0
    %95 = vmatpush1.msra.mxu0 %v75
    %96 = vmatprep.subr.mxu0 0.0
    %97 = vmatpush1.msra.mxu0 %v74
    %98 = vmatprep.subr.mxu0 0.0
    %99 = vmatpush1.msra.mxu0 %v73
    %100 = vmatprep.subr.mxu0 0.0
    %101 = vmatpush1.msra.mxu0 %v72
    %102 = vmatprep.subr.mxu0 0.0
    %103 = vmatpush1.msra.mxu0 %v71
    %104 = vmatprep.subr.mxu0 0.0
    %105 = vmatpush1.msra.mxu0 %v70
    %106 = vmatprep.subr.mxu0 0.0
    %107 = vmatpush1.msra.mxu0 %v69
    %108 = vmatprep.subr.mxu0 0.0
    %109 = vmatpush1.msra.mxu0 %v68
    %110 = vmatprep.subr.mxu0 0.0
    %111 = vmatpush1.msra.mxu0 %v67
    %112 = vmatprep.subr.mxu0 0.0
    %113 = vmatpush1.msra.mxu0 %v66
    %114 = vmatprep.subr.mxu0 0.0
    %115 = vmatpush1.msra.mxu0 %v65
    %116 = vmatprep.subr.mxu0 0.0
    %117 = vmatpush1.msra.mxu0 %v64
    %118 = vmatprep.subr.mxu0 0.0
    %119 = vmatpush1.msra.mxu0 %v63
    %120 = vmatprep.subr.mxu0 0.0
    %121 = vmatpush1.msra.mxu0 %v62
    %122 = vmatprep.subr.mxu0 0.0
    %123 = vmatpush1.msra.mxu0 %v61
    %124 = vmatprep.subr.mxu0 0.0
    %125 = vmatpush1.msra.mxu0 %v60
    %126 = vmatprep.subr.mxu0 0.0
    %127 = vmatpush2.msra.mxu0 0.0
    %128 = vmatprep.subr.mxu0 0.0
    %129 = vmatpush2.msra.mxu0 0.0
    %130 = vmatprep.subr.mxu0 0.0
    %131 = vmatpush2.msra.mxu0 0.0
    %132 = vmatprep.subr.mxu0 0.0
    %133 = vmatpush2.msra.mxu0 0.0
    %134 = vmatprep.subr.mxu0 0.0
    %135 = vmatpush2.msra.mxu0 0.0
    %136 = vmatprep.subr.mxu0 0.0
    %137 = vmatpush2.msra.mxu0 0.0
    %138 = vmatprep.subr.mxu0 0.0
    %139 = vmatpush2.msra.mxu0 0.0
    %140 = vmatprep.subr.mxu0 0.0
    %141 = vmatpush2.msra.mxu0 0.0
    %142 = vmatprep.subr.mxu0 0.0
    %143 = vmatpush2.msra.mxu0 0.0
    %144 = vmatprep.subr.mxu0 0.0
    %145 = vmatpush2.msra.mxu0 0.0
    %146 = vmatprep.subr.mxu0 0.0
    %147 = vmatpush2.msra.mxu0 0.0
    %148 = vmatprep.subr.mxu0 0.0
    %149 = vmatpush2.msra.mxu0 0.0
    %150 = vmatprep.subr.mxu0 0.0
    %151 = vmatpush2.msra.mxu0 0.0
    %152 = vmatprep.subr.mxu0 0.0
    %153 = vmatpush2.msra.mxu0 0.0
    %154 = vmatprep.subr.mxu0 0.0
    %155 = vmatpush2.msra.mxu0 0.0
    %156 = vmatprep.subr.mxu0 0.0
    %157 = vmatpush2.msra.mxu0 0.0
    %158 = vmatprep.mubr.f32.mxu0 0.0
    %159 = vmatmul.mubr.f32.gmra.mxu0 %v28
    %v160 = vpop.f32.mrf.mxu0
    %v161 = vadd.f32 0.0, %v160
    %v162 = vpop.f32.mrf.mxu0
    %163 = vmatprep.mubr.f32.mxu0 0.0
    %164 = vmatmul.mubr.f32.gmra.mxu0 %v29
    %v165 = vpop.f32.mrf.mxu0
    %v166 = vadd.f32 0.0, %v165
    %v167 = vpop.f32.mrf.mxu0
    %168 = vmatprep.mubr.f32.mxu0 0.0
    %169 = vmatmul.mubr.f32.gmra.mxu0 %v30
    %v170 = vpop.f32.mrf.mxu0
    %v171 = vadd.f32 0.0, %v170
    %v172 = vpop.f32.mrf.mxu0
    %173 = vmatprep.mubr.f32.mxu0 0.0
    %174 = vmatmul.mubr.f32.gmra.mxu0 %v31
    %v175 = vpop.f32.mrf.mxu0
    %v176 = vadd.f32 0.0, %v175
    %v177 = vpop.f32.mrf.mxu0
    %178 = vmatprep.mubr.f32.mxu0 0.0
    %179 = vmatmul.mubr.f32.gmra.mxu0 %v32
    %v180 = vpop.f32.mrf.mxu0
    %v181 = vadd.f32 0.0, %v180
    %v182 = vpop.f32.mrf.mxu0
    %183 = vmatprep.mubr.f32.mxu0 0.0
    %184 = vmatmul.mubr.f32.gmra.mxu0 %v33
    %v185 = vpop.f32.mrf.mxu0
    %v186 = vadd.f32 0.0, %v185
    %v187 = vpop.f32.mrf.mxu0
    %188 = vmatprep.mubr.f32.mxu0 0.0
    %189 = vmatmul.mubr.f32.gmra.mxu0 %v34
    %v190 = vpop.f32.mrf.mxu0
    %v191 = vadd.f32 0.0, %v190
    %v192 = vpop.f32.mrf.mxu0
    %193 = vmatprep.mubr.f32.mxu0 0.0
    %194 = vmatmul.mubr.f32.gmra.mxu0 %v35
    %v195 = vpop.f32.mrf.mxu0
    %v196 = vadd.f32 0.0, %v195
    %v197 = vpop.f32.mrf.mxu0
    %198 = vmatprep.mubr.f32.mxu0 0.0
    %199 = vmatmul.mubr.f32.gmra.mxu0 %v36
    %v200 = vpop.f32.mrf.mxu0
    %v201 = vadd.f32 0.0, %v200
    %v202 = vpop.f32.mrf.mxu0
    %203 = vmatprep.mubr.f32.mxu0 0.0
    %204 = vmatmul.mubr.f32.gmra.mxu0 %v37
    %v205 = vpop.f32.mrf.mxu0
    %v206 = vadd.f32 0.0, %v205
    %v207 = vpop.f32.mrf.mxu0
    %208 = vmatprep.mubr.f32.mxu0 0.0
    %209 = vmatmul.mubr.f32.gmra.mxu0 %v38
    %v210 = vpop.f32.mrf.mxu0
    %v211 = vadd.f32 0.0, %v210
    %v212 = vpop.f32.mrf.mxu0
    %213 = vmatprep.mubr.f32.mxu0 0.0
    %214 = vmatmul.mubr.f32.gmra.mxu0 %v39
    %v215 = vpop.f32.mrf.mxu0
    %v216 = vadd.f32 0.0, %v215
    %v217 = vpop.f32.mrf.mxu0
    %218 = vmatprep.mubr.f32.mxu0 0.0
    %219 = vmatmul.mubr.f32.gmra.mxu0 %v40
    %v220 = vpop.f32.mrf.mxu0
    %v221 = vadd.f32 0.0, %v220
    %v222 = vpop.f32.mrf.mxu0
    %223 = vmatprep.mubr.f32.mxu0 0.0
    %224 = vmatmul.mubr.f32.gmra.mxu0 %v41
    %v225 = vpop.f32.mrf.mxu0
    %v226 = vadd.f32 0.0, %v225
    %v227 = vpop.f32.mrf.mxu0
    %228 = vmatprep.mubr.f32.mxu0 0.0
    %229 = vmatmul.mubr.f32.gmra.mxu0 %v42
    %v230 = vpop.f32.mrf.mxu0
    %v231 = vadd.f32 0.0, %v230
    %v232 = vpop.f32.mrf.mxu0
    %233 = vmatprep.mubr.f32.mxu0 0.0
    %234 = vmatmul.mubr.f32.gmra.mxu0 %v43
    %v235 = vpop.f32.mrf.mxu0
    %v236 = vadd.f32 0.0, %v235
    %v237 = vpop.f32.mrf.mxu0
    %238 = vdwg.mxu0
    %v240 = vlaneseq
    %v241 = vshrl.u32 %v240, 7
    %v242 = vsub.s32 0, %v241
    %v243 = vrot.slane %v76, %v242
    %v245 = vmul.f32 %v28, %v243
    %v246 = vmul.f32 %v29, %v243
    %v247 = vmul.f32 %v30, %v243
    %v248 = vmul.f32 %v31, %v243
    %v249 = vmul.f32 %v32, %v243
    %v250 = vmul.f32 %v33, %v243
    %v251 = vmul.f32 %v34, %v243
    %v252 = vmul.f32 %v35, %v243
    %v253 = vmul.f32 %v36, %v243
    %v254 = vmul.f32 %v37, %v243
    %v255 = vmul.f32 %v38, %v243
    %v256 = vmul.f32 %v39, %v243
    %v257 = vmul.f32 %v40, %v243
    %v258 = vmul.f32 %v41, %v243
    %v259 = vmul.f32 %v42, %v243
    %v260 = vmul.f32 %v43, %v243
    %261 = vadd.xlane.f32.xlu0 %v245
    %v262 = vpop.xlane.xlu0 %261
    %263 = vadd.xlane.f32.xlu0 %v246
    %v264 = vpop.xlane.xlu0 %263
    %265 = vadd.xlane.f32.xlu0 %v247
    %v266 = vpop.xlane.xlu0 %265
    %267 = vadd.xlane.f32.xlu0 %v248
    %v268 = vpop.xlane.xlu0 %267
    %269 = vadd.xlane.f32.xlu0 %v249
    %v270 = vpop.xlane.xlu0 %269
    %271 = vadd.xlane.f32.xlu0 %v250
    %v272 = vpop.xlane.xlu0 %271
    %273 = vadd.xlane.f32.xlu0 %v251
    %v274 = vpop.xlane.xlu0 %273
    %275 = vadd.xlane.f32.xlu0 %v252
    %v276 = vpop.xlane.xlu0 %275
    %277 = vadd.xlane.f32.xlu0 %v253
    %v278 = vpop.xlane.xlu0 %277
    %279 = vadd.xlane.f32.xlu0 %v254
    %v280 = vpop.xlane.xlu0 %279
    %281 = vadd.xlane.f32.xlu0 %v255
    %v282 = vpop.xlane.xlu0 %281
    %283 = vadd.xlane.f32.xlu0 %v256
    %v284 = vpop.xlane.xlu0 %283
    %285 = vadd.xlane.f32.xlu0 %v257
    %v286 = vpop.xlane.xlu0 %285
    %287 = vadd.xlane.f32.xlu0 %v258
    %v288 = vpop.xlane.xlu0 %287
    %289 = vadd.xlane.f32.xlu0 %v259
    %v290 = vpop.xlane.xlu0 %289
    %291 = vadd.xlane.f32.xlu0 %v260
    %v292 = vpop.xlane.xlu0 %291
    %v294 = vlaneseq
    %v295 = vshrl.u32 %v294, 7
    %v296 = vsub.s32 0, %v295
    %v297 = vrot.slane %v27, %v296
    %v299 = vmul.f32 %v297, %v161
    %v300 = vmul.f32 %v297, %v166
    %v301 = vmul.f32 %v297, %v171
    %v302 = vmul.f32 %v297, %v176
    %v303 = vmul.f32 %v297, %v181
    %v304 = vmul.f32 %v297, %v186
    %v305 = vmul.f32 %v297, %v191
    %v306 = vmul.f32 %v297, %v196
    %v307 = vmul.f32 %v297, %v201
    %v308 = vmul.f32 %v297, %v206
    %v309 = vmul.f32 %v297, %v211
    %v310 = vmul.f32 %v297, %v216
    %v311 = vmul.f32 %v297, %v221
    %v312 = vmul.f32 %v297, %v226
    %v313 = vmul.f32 %v297, %v231
    %v314 = vmul.f32 %v297, %v236
    %315 = vadd.xlane.f32.xlu0 %v299
    %v316 = vpop.xlane.xlu0 %315
    %317 = vadd.xlane.f32.xlu0 %v300
    %v318 = vpop.xlane.xlu0 %317
    %319 = vadd.xlane.f32.xlu0 %v301
    %v320 = vpop.xlane.xlu0 %319
    %321 = vadd.xlane.f32.xlu0 %v302
    %v322 = vpop.xlane.xlu0 %321
    %323 = vadd.xlane.f32.xlu0 %v303
    %v324 = vpop.xlane.xlu0 %323
    %325 = vadd.xlane.f32.xlu0 %v304
    %v326 = vpop.xlane.xlu0 %325
    %327 = vadd.xlane.f32.xlu0 %v305
    %v328 = vpop.xlane.xlu0 %327
    %329 = vadd.xlane.f32.xlu0 %v306
    %v330 = vpop.xlane.xlu0 %329
    %331 = vadd.xlane.f32.xlu0 %v307
    %v332 = vpop.xlane.xlu0 %331
    %333 = vadd.xlane.f32.xlu0 %v308
    %v334 = vpop.xlane.xlu0 %333
    %335 = vadd.xlane.f32.xlu0 %v309
    %v336 = vpop.xlane.xlu0 %335
    %337 = vadd.xlane.f32.xlu0 %v310
    %v338 = vpop.xlane.xlu0 %337
    %339 = vadd.xlane.f32.xlu0 %v311
    %v340 = vpop.xlane.xlu0 %339
    %341 = vadd.xlane.f32.xlu0 %v312
    %v342 = vpop.xlane.xlu0 %341
    %343 = vadd.xlane.f32.xlu0 %v313
    %v344 = vpop.xlane.xlu0 %343
    %345 = vadd.xlane.f32.xlu0 %v314
    %v346 = vpop.xlane.xlu0 %345
    %v347 = vadd.f32 %v316, %v262
    %v348 = vadd.f32 %v318, %v264
    %v349 = vadd.f32 %v320, %v266
    %v350 = vadd.f32 %v322, %v268
    %v351 = vadd.f32 %v324, %v270
    %v352 = vadd.f32 %v326, %v272
    %v353 = vadd.f32 %v328, %v274
    %v354 = vadd.f32 %v330, %v276
    %v355 = vadd.f32 %v332, %v278
    %v356 = vadd.f32 %v334, %v280
    %v357 = vadd.f32 %v336, %v282
    %v358 = vadd.f32 %v338, %v284
    %v359 = vadd.f32 %v340, %v286
    %v360 = vadd.f32 %v342, %v288
    %v361 = vadd.f32 %v344, %v290
    %v362 = vadd.f32 %v346, %v292
    %vm363 = vcmp.gt.f32.partialorder %v44, 0.0
    %vm364 = vcmp.gt.f32.partialorder %v45, 0.0
    %vm365 = vcmp.gt.f32.partialorder %v46, 0.0
    %vm366 = vcmp.gt.f32.partialorder %v47, 0.0
    %vm367 = vcmp.gt.f32.partialorder %v48, 0.0
    %vm368 = vcmp.gt.f32.partialorder %v49, 0.0
    %vm369 = vcmp.gt.f32.partialorder %v50, 0.0
    %vm370 = vcmp.gt.f32.partialorder %v51, 0.0
    %vm371 = vcmp.gt.f32.partialorder %v52, 0.0
    %vm372 = vcmp.gt.f32.partialorder %v53, 0.0
    %vm373 = vcmp.gt.f32.partialorder %v54, 0.0
    %vm374 = vcmp.gt.f32.partialorder %v55, 0.0
    %vm375 = vcmp.gt.f32.partialorder %v56, 0.0
    %vm376 = vcmp.gt.f32.partialorder %v57, 0.0
    %vm377 = vcmp.gt.f32.partialorder %v58, 0.0
    %vm378 = vcmp.gt.f32.partialorder %v59, 0.0
    %v379 = vsel %vm363, %v347, -1e+30
    %v380 = vsel %vm364, %v348, -1e+30
    %v381 = vsel %vm365, %v349, -1e+30
    %v382 = vsel %vm366, %v350, -1e+30
    %v383 = vsel %vm367, %v351, -1e+30
    %v384 = vsel %vm368, %v352, -1e+30
    %v385 = vsel %vm369, %v353, -1e+30
    %v386 = vsel %vm370, %v354, -1e+30
    %v387 = vsel %vm371, %v355, -1e+30
    %v388 = vsel %vm372, %v356, -1e+30
    %v389 = vsel %vm373, %v357, -1e+30
    %v390 = vsel %vm374, %v358, -1e+30
    %v391 = vsel %vm375, %v359, -1e+30
    %v392 = vsel %vm376, %v360, -1e+30
    %v393 = vsel %vm377, %v361, -1e+30
    %v394 = vsel %vm378, %v362, -1e+30
    %vm395 = vcmask 7168
    %v396 = vsel %vm395, %v379, -inf
    %v397 = vsel %vm395, %v380, -inf
    %v398 = vsel %vm395, %v381, -inf
    %v399 = vsel %vm395, %v382, -inf
    %v400 = vsel %vm395, %v383, -inf
    %v401 = vmax.f32 %v396, %v400
    %v402 = vsel %vm395, %v384, -inf
    %v403 = vmax.f32 %v397, %v402
    %v404 = vsel %vm395, %v385, -inf
    %v405 = vmax.f32 %v398, %v404
    %v406 = vsel %vm395, %v386, -inf
    %v407 = vmax.f32 %v399, %v406
    %v408 = vsel %vm395, %v387, -inf
    %v409 = vmax.f32 %v401, %v408
    %v410 = vsel %vm395, %v388, -inf
    %v411 = vmax.f32 %v403, %v410
    %v412 = vsel %vm395, %v389, -inf
    %v413 = vmax.f32 %v405, %v412
    %v414 = vsel %vm395, %v390, -inf
    %v415 = vmax.f32 %v407, %v414
    %v416 = vsel %vm395, %v391, -inf
    %v417 = vmax.f32 %v409, %v416
    %v418 = vsel %vm395, %v392, -inf
    %v419 = vmax.f32 %v411, %v418
    %v420 = vsel %vm395, %v393, -inf
    %v421 = vmax.f32 %v413, %v420
    %v422 = vsel %vm395, %v394, -inf
    %v423 = vmax.f32 %v415, %v422
    %v424 = vmax.f32 %v417, %v419
    %v425 = vmax.f32 %v421, %v423
    %v426 = vmax.f32 %v424, %v425
    %v427 = vrot.slane %v426, 4
    %v428 = vmax.f32 %v426, %v427
    %v429 = vrot.slane %v428, 2
    %v430 = vmax.f32 %v428, %v429
    %v431 = vrot.slane %v430, 1
    %v432 = vmax.f32 %v430, %v431
    %v433 = vsub.f32 %v379, %v432
    %v434 = vsub.f32 %v380, %v432
    %v435 = vsub.f32 %v381, %v432
    %v436 = vsub.f32 %v382, %v432
    %v437 = vsub.f32 %v383, %v432
    %v438 = vsub.f32 %v384, %v432
    %v439 = vsub.f32 %v385, %v432
    %v440 = vsub.f32 %v386, %v432
    %v441 = vsub.f32 %v387, %v432
    %v442 = vsub.f32 %v388, %v432
    %v443 = vsub.f32 %v389, %v432
    %v444 = vsub.f32 %v390, %v432
    %v445 = vsub.f32 %v391, %v432
    %v446 = vsub.f32 %v392, %v432
    %v447 = vsub.f32 %v393, %v432
    %v448 = vsub.f32 %v394, %v432
    %v449 = vmul.f32 %v433, 1.442695
    %v450 = vpow.pop %v449
    %v451 = vmul.f32 %v434, 1.442695
    %v452 = vpow.pop %v451
    %v453 = vmul.f32 %v435, 1.442695
    %v454 = vpow.pop %v453
    %v455 = vmul.f32 %v436, 1.442695
    %v456 = vpow.pop %v455
    %v457 = vmul.f32 %v437, 1.442695
    %v458 = vpow.pop %v457
    %v459 = vmul.f32 %v438, 1.442695
    %v460 = vpow.pop %v459
    %v461 = vmul.f32 %v439, 1.442695
    %v462 = vpow.pop %v461
    %v463 = vmul.f32 %v440, 1.442695
    %v464 = vpow.pop %v463
    %v465 = vmul.f32 %v441, 1.442695
    %v466 = vpow.pop %v465
    %v467 = vmul.f32 %v442, 1.442695
    %v468 = vpow.pop %v467
    %v469 = vmul.f32 %v443, 1.442695
    %v470 = vpow.pop %v469
    %v471 = vmul.f32 %v444, 1.442695
    %v472 = vpow.pop %v471
    %v473 = vmul.f32 %v445, 1.442695
    %v474 = vpow.pop %v473
    %v475 = vmul.f32 %v446, 1.442695
    %v476 = vpow.pop %v475
    %v477 = vmul.f32 %v447, 1.442695
    %v478 = vpow.pop %v477
    %v479 = vmul.f32 %v448, 1.442695
    %v480 = vpow.pop %v479
    %v481 = vmul.f32 %v450, %v44
    %v482 = vmul.f32 %v452, %v45
    %v483 = vmul.f32 %v454, %v46
    %v484 = vmul.f32 %v456, %v47
    %v485 = vmul.f32 %v458, %v48
    %v486 = vmul.f32 %v460, %v49
    %v487 = vmul.f32 %v462, %v50
    %v488 = vmul.f32 %v464, %v51
    %v489 = vmul.f32 %v466, %v52
    %v490 = vmul.f32 %v468, %v53
    %v491 = vmul.f32 %v470, %v54
    %v492 = vmul.f32 %v472, %v55
    %v493 = vmul.f32 %v474, %v56
    %v494 = vmul.f32 %v476, %v57
    %v495 = vmul.f32 %v478, %v58
    %v496 = vmul.f32 %v480, %v59
    %v497 = vsel %vm395, %v481, 0.0
    %v498 = vsel %vm395, %v482, 0.0
    %v499 = vadd.f32 %v497, %v498
    %v500 = vsel %vm395, %v483, 0.0
    %v501 = vadd.f32 %v499, %v500
    %v502 = vsel %vm395, %v484, 0.0
    %v503 = vadd.f32 %v501, %v502
    %v504 = vsel %vm395, %v485, 0.0
    %v505 = vadd.f32 %v503, %v504
    %v506 = vsel %vm395, %v486, 0.0
    %v507 = vadd.f32 %v505, %v506
    %v508 = vsel %vm395, %v487, 0.0
    %v509 = vadd.f32 %v507, %v508
    %v510 = vsel %vm395, %v488, 0.0
    %v511 = vadd.f32 %v509, %v510
    %v512 = vsel %vm395, %v489, 0.0
    %v513 = vadd.f32 %v511, %v512
    %v514 = vsel %vm395, %v490, 0.0
    %v515 = vadd.f32 %v513, %v514
    %v516 = vsel %vm395, %v491, 0.0
    %v517 = vadd.f32 %v515, %v516
    %v518 = vsel %vm395, %v492, 0.0
    %v519 = vadd.f32 %v517, %v518
    %v520 = vsel %vm395, %v493, 0.0
    %v521 = vadd.f32 %v519, %v520
    %v522 = vsel %vm395, %v494, 0.0
    %v523 = vadd.f32 %v521, %v522
    %v524 = vsel %vm395, %v495, 0.0
    %v525 = vadd.f32 %v523, %v524
    %v526 = vsel %vm395, %v496, 0.0
    %v527 = vadd.f32 %v525, %v526
    %v528 = vrot.slane %v527, 4
    %v529 = vadd.f32 %v527, %v528
    %v530 = vrot.slane %v529, 2
    %v531 = vadd.f32 %v529, %v530
    %v532 = vrot.slane %v531, 1
    %v533 = vadd.f32 %v531, %v532
    %v534 = vmax.f32 %v533, 1e-30
    %v535 = vrcp.pop %v534
    %v536 = vmul.f32 %v481, %v535
    %v537 = vmul.f32 %v482, %v535
    %v538 = vmul.f32 %v483, %v535
    %v539 = vmul.f32 %v484, %v535
    %v540 = vmul.f32 %v485, %v535
    %v541 = vmul.f32 %v486, %v535
    %v542 = vmul.f32 %v487, %v535
    %v543 = vmul.f32 %v488, %v535
    %v544 = vmul.f32 %v489, %v535
    %v545 = vmul.f32 %v490, %v535
    %v546 = vmul.f32 %v491, %v535
    %v547 = vmul.f32 %v492, %v535
    %v548 = vmul.f32 %v493, %v535
    %v549 = vmul.f32 %v494, %v535
    %v550 = vmul.f32 %v495, %v535
    %v551 = vmul.f32 %v496, %v535
    %553 = vset.pattern.permute.xlu0 0
    %554 = vperm.xlu0 %553, %v536
    %v555 = vpop.permute.xlu0 %554
    %558 = vset.pattern.permute.xlu0 0
    %559 = vperm.xlu0 %558, %v537
    %v560 = vpop.permute.xlu0 %559
    %563 = vset.pattern.permute.xlu0 0
    %564 = vperm.xlu0 %563, %v538
    %v565 = vpop.permute.xlu0 %564
    %568 = vset.pattern.permute.xlu0 0
    %569 = vperm.xlu0 %568, %v539
    %v570 = vpop.permute.xlu0 %569
    %573 = vset.pattern.permute.xlu0 0
    %574 = vperm.xlu0 %573, %v540
    %v575 = vpop.permute.xlu0 %574
    %578 = vset.pattern.permute.xlu0 0
    %579 = vperm.xlu0 %578, %v541
    %v580 = vpop.permute.xlu0 %579
    %583 = vset.pattern.permute.xlu0 0
    %584 = vperm.xlu0 %583, %v542
    %v585 = vpop.permute.xlu0 %584
    %588 = vset.pattern.permute.xlu0 0
    %589 = vperm.xlu0 %588, %v543
    %v590 = vpop.permute.xlu0 %589
    %593 = vset.pattern.permute.xlu0 0
    %594 = vperm.xlu0 %593, %v544
    %v595 = vpop.permute.xlu0 %594
    %598 = vset.pattern.permute.xlu0 0
    %599 = vperm.xlu0 %598, %v545
    %v600 = vpop.permute.xlu0 %599
    %603 = vset.pattern.permute.xlu0 0
    %604 = vperm.xlu0 %603, %v546
    %v605 = vpop.permute.xlu0 %604
    %608 = vset.pattern.permute.xlu0 0
    %609 = vperm.xlu0 %608, %v547
    %v610 = vpop.permute.xlu0 %609
    %613 = vset.pattern.permute.xlu0 0
    %614 = vperm.xlu0 %613, %v548
    %v615 = vpop.permute.xlu0 %614
    %618 = vset.pattern.permute.xlu0 0
    %619 = vperm.xlu0 %618, %v549
    %v620 = vpop.permute.xlu0 %619
    %623 = vset.pattern.permute.xlu0 0
    %624 = vperm.xlu0 %623, %v550
    %v625 = vpop.permute.xlu0 %624
    %628 = vset.pattern.permute.xlu0 0
    %629 = vperm.xlu0 %628, %v551
    %v630 = vpop.permute.xlu0 %629
    %v632 = vmul.f32 %v555, %v28
    %v633 = vmul.f32 %v560, %v29
    %v634 = vmul.f32 %v565, %v30
    %v635 = vmul.f32 %v570, %v31
    %v636 = vmul.f32 %v575, %v32
    %v637 = vmul.f32 %v580, %v33
    %v638 = vmul.f32 %v585, %v34
    %v639 = vmul.f32 %v590, %v35
    %v640 = vmul.f32 %v595, %v36
    %v641 = vmul.f32 %v600, %v37
    %v642 = vmul.f32 %v605, %v38
    %v643 = vmul.f32 %v610, %v39
    %v644 = vmul.f32 %v615, %v40
    %v645 = vmul.f32 %v620, %v41
    %v646 = vmul.f32 %v625, %v42
    %v647 = vmul.f32 %v630, %v43
    %v648 = vadd.f32 %v632, %v633
    %v649 = vadd.f32 %v648, %v634
    %v650 = vadd.f32 %v649, %v635
    %v651 = vadd.f32 %v650, %v636
    %v652 = vadd.f32 %v651, %v637
    %v653 = vadd.f32 %v652, %v638
    %v654 = vadd.f32 %v653, %v639
    %v655 = vadd.f32 %v654, %v640
    %v656 = vadd.f32 %v655, %v641
    %v657 = vadd.f32 %v656, %v642
    %v658 = vadd.f32 %v657, %v643
    %v659 = vadd.f32 %v658, %v644
    %v660 = vadd.f32 %v659, %v645
    %v661 = vadd.f32 %v660, %v646
    %v662 = vadd.f32 %v661, %v647
    %v663 = vrot.slane %v662, 4
    %v664 = vadd.f32 %v662, %v663
    %v665 = vrot.slane %v664, 2
    %v666 = vadd.f32 %v664, %v665
    %v667 = vrot.slane %v666, 1
    %v668 = vadd.f32 %v666, %v667
    %v669 = vadd.f32 %v27, %v668
    %v671 = vlaneseq
    %v672 = vshrl.u32 %v671, 7
    %v673 = vsub.s32 0, %v672
    %v674 = vrot.slane %v669, %v673
    %v676 = vmul.f32 %v674, %v161
    %v677 = vmul.f32 %v674, %v166
    %v678 = vmul.f32 %v674, %v171
    %v679 = vmul.f32 %v674, %v176
    %v680 = vmul.f32 %v674, %v181
    %v681 = vmul.f32 %v674, %v186
    %v682 = vmul.f32 %v674, %v191
    %v683 = vmul.f32 %v674, %v196
    %v684 = vmul.f32 %v674, %v201
    %v685 = vmul.f32 %v674, %v206
    %v686 = vmul.f32 %v674, %v211
    %v687 = vmul.f32 %v674, %v216
    %v688 = vmul.f32 %v674, %v221
    %v689 = vmul.f32 %v674, %v226
    %v690 = vmul.f32 %v674, %v231
    %v691 = vmul.f32 %v674, %v236
    %692 = vadd.xlane.f32.xlu0 %v676
    %v693 = vpop.xlane.xlu0 %692
    %694 = vadd.xlane.f32.xlu0 %v677
    %v695 = vpop.xlane.xlu0 %694
    %696 = vadd.xlane.f32.xlu0 %v678
    %v697 = vpop.xlane.xlu0 %696
    %698 = vadd.xlane.f32.xlu0 %v679
    %v699 = vpop.xlane.xlu0 %698
    %700 = vadd.xlane.f32.xlu0 %v680
    %v701 = vpop.xlane.xlu0 %700
    %702 = vadd.xlane.f32.xlu0 %v681
    %v703 = vpop.xlane.xlu0 %702
    %704 = vadd.xlane.f32.xlu0 %v682
    %v705 = vpop.xlane.xlu0 %704
    %706 = vadd.xlane.f32.xlu0 %v683
    %v707 = vpop.xlane.xlu0 %706
    %708 = vadd.xlane.f32.xlu0 %v684
    %v709 = vpop.xlane.xlu0 %708
    %710 = vadd.xlane.f32.xlu0 %v685
    %v711 = vpop.xlane.xlu0 %710
    %712 = vadd.xlane.f32.xlu0 %v686
    %v713 = vpop.xlane.xlu0 %712
    %714 = vadd.xlane.f32.xlu0 %v687
    %v715 = vpop.xlane.xlu0 %714
    %716 = vadd.xlane.f32.xlu0 %v688
    %v717 = vpop.xlane.xlu0 %716
    %718 = vadd.xlane.f32.xlu0 %v689
    %v719 = vpop.xlane.xlu0 %718
    %720 = vadd.xlane.f32.xlu0 %v690
    %v721 = vpop.xlane.xlu0 %720
    %722 = vadd.xlane.f32.xlu0 %v691
    %v723 = vpop.xlane.xlu0 %722
    %v724 = vadd.f32 %v693, %v262
    %v725 = vadd.f32 %v695, %v264
    %v726 = vadd.f32 %v697, %v266
    %v727 = vadd.f32 %v699, %v268
    %v728 = vadd.f32 %v701, %v270
    %v729 = vadd.f32 %v703, %v272
    %v730 = vadd.f32 %v705, %v274
    %v731 = vadd.f32 %v707, %v276
    %v732 = vadd.f32 %v709, %v278
    %v733 = vadd.f32 %v711, %v280
    %v734 = vadd.f32 %v713, %v282
    %v735 = vadd.f32 %v715, %v284
    %v736 = vadd.f32 %v717, %v286
    %v737 = vadd.f32 %v719, %v288
    %v738 = vadd.f32 %v721, %v290
    %v739 = vadd.f32 %v723, %v292
    %v740 = vsel %vm363, %v724, -1e+30
    %v741 = vsel %vm364, %v725, -1e+30
    %v742 = vsel %vm365, %v726, -1e+30
    %v743 = vsel %vm366, %v727, -1e+30
    %v744 = vsel %vm367, %v728, -1e+30
    %v745 = vsel %vm368, %v729, -1e+30
    %v746 = vsel %vm369, %v730, -1e+30
    %v747 = vsel %vm370, %v731, -1e+30
    %v748 = vsel %vm371, %v732, -1e+30
    %v749 = vsel %vm372, %v733, -1e+30
    %v750 = vsel %vm373, %v734, -1e+30
    %v751 = vsel %vm374, %v735, -1e+30
    %v752 = vsel %vm375, %v736, -1e+30
    %v753 = vsel %vm376, %v737, -1e+30
    %v754 = vsel %vm377, %v738, -1e+30
    %v755 = vsel %vm378, %v739, -1e+30
    %v756 = vsel %vm395, %v740, -inf
    %v757 = vsel %vm395, %v741, -inf
    %v758 = vsel %vm395, %v742, -inf
    %v759 = vsel %vm395, %v743, -inf
    %v760 = vsel %vm395, %v744, -inf
    %v761 = vmax.f32 %v756, %v760
    %v762 = vsel %vm395, %v745, -inf
    %v763 = vmax.f32 %v757, %v762
    %v764 = vsel %vm395, %v746, -inf
    %v765 = vmax.f32 %v758, %v764
    %v766 = vsel %vm395, %v747, -inf
    %v767 = vmax.f32 %v759, %v766
    %v768 = vsel %vm395, %v748, -inf
    %v769 = vmax.f32 %v761, %v768
    %v770 = vsel %vm395, %v749, -inf
    %v771 = vmax.f32 %v763, %v770
    %v772 = vsel %vm395, %v750, -inf
    %v773 = vmax.f32 %v765, %v772
    %v774 = vsel %vm395, %v751, -inf
    %v775 = vmax.f32 %v767, %v774
    %v776 = vsel %vm395, %v752, -inf
    %v777 = vmax.f32 %v769, %v776
    %v778 = vsel %vm395, %v753, -inf
    %v779 = vmax.f32 %v771, %v778
    %v780 = vsel %vm395, %v754, -inf
    %v781 = vmax.f32 %v773, %v780
    %v782 = vsel %vm395, %v755, -inf
    %v783 = vmax.f32 %v775, %v782
    %v784 = vmax.f32 %v777, %v779
    %v785 = vmax.f32 %v781, %v783
    %v786 = vmax.f32 %v784, %v785
    %v787 = vrot.slane %v786, 4
    %v788 = vmax.f32 %v786, %v787
    %v789 = vrot.slane %v788, 2
    %v790 = vmax.f32 %v788, %v789
    %v791 = vrot.slane %v790, 1
    %v792 = vmax.f32 %v790, %v791
    %v793 = vsub.f32 %v740, %v792
    %v794 = vsub.f32 %v741, %v792
    %v795 = vsub.f32 %v742, %v792
    %v796 = vsub.f32 %v743, %v792
    %v797 = vsub.f32 %v744, %v792
    %v798 = vsub.f32 %v745, %v792
    %v799 = vsub.f32 %v746, %v792
    %v800 = vsub.f32 %v747, %v792
    %v801 = vsub.f32 %v748, %v792
    %v802 = vsub.f32 %v749, %v792
    %v803 = vsub.f32 %v750, %v792
    %v804 = vsub.f32 %v751, %v792
    %v805 = vsub.f32 %v752, %v792
    %v806 = vsub.f32 %v753, %v792
    %v807 = vsub.f32 %v754, %v792
    %v808 = vsub.f32 %v755, %v792
    %v809 = vmul.f32 %v793, 1.442695
    %v810 = vpow.pop %v809
    %v811 = vmul.f32 %v794, 1.442695
    %v812 = vpow.pop %v811
    %v813 = vmul.f32 %v795, 1.442695
    %v814 = vpow.pop %v813
    %v815 = vmul.f32 %v796, 1.442695
    %v816 = vpow.pop %v815
    %v817 = vmul.f32 %v797, 1.442695
    %v818 = vpow.pop %v817
    %v819 = vmul.f32 %v798, 1.442695
    %v820 = vpow.pop %v819
    %v821 = vmul.f32 %v799, 1.442695
    %v822 = vpow.pop %v821
    %v823 = vmul.f32 %v800, 1.442695
    %v824 = vpow.pop %v823
    %v825 = vmul.f32 %v801, 1.442695
    %v826 = vpow.pop %v825
    %v827 = vmul.f32 %v802, 1.442695
    %v828 = vpow.pop %v827
    %v829 = vmul.f32 %v803, 1.442695
    %v830 = vpow.pop %v829
    %v831 = vmul.f32 %v804, 1.442695
    %v832 = vpow.pop %v831
    %v833 = vmul.f32 %v805, 1.442695
    %v834 = vpow.pop %v833
    %v835 = vmul.f32 %v806, 1.442695
    %v836 = vpow.pop %v835
    %v837 = vmul.f32 %v807, 1.442695
    %v838 = vpow.pop %v837
    %v839 = vmul.f32 %v808, 1.442695
    %v840 = vpow.pop %v839
    %v841 = vmul.f32 %v810, %v44
    %v842 = vmul.f32 %v812, %v45
    %v843 = vmul.f32 %v814, %v46
    %v844 = vmul.f32 %v816, %v47
    %v845 = vmul.f32 %v818, %v48
    %v846 = vmul.f32 %v820, %v49
    %v847 = vmul.f32 %v822, %v50
    %v848 = vmul.f32 %v824, %v51
    %v849 = vmul.f32 %v826, %v52
    %v850 = vmul.f32 %v828, %v53
    %v851 = vmul.f32 %v830, %v54
    %v852 = vmul.f32 %v832, %v55
    %v853 = vmul.f32 %v834, %v56
    %v854 = vmul.f32 %v836, %v57
    %v855 = vmul.f32 %v838, %v58
    %v856 = vmul.f32 %v840, %v59
    %v857 = vsel %vm395, %v841, 0.0
    %v858 = vsel %vm395, %v842, 0.0
    %v859 = vadd.f32 %v857, %v858
    %v860 = vsel %vm395, %v843, 0.0
    %v861 = vadd.f32 %v859, %v860
    %v862 = vsel %vm395, %v844, 0.0
    %v863 = vadd.f32 %v861, %v862
    %v864 = vsel %vm395, %v845, 0.0
    %v865 = vadd.f32 %v863, %v864
    %v866 = vsel %vm395, %v846, 0.0
    %v867 = vadd.f32 %v865, %v866
    %v868 = vsel %vm395, %v847, 0.0
    %v869 = vadd.f32 %v867, %v868
    %v870 = vsel %vm395, %v848, 0.0
    %v871 = vadd.f32 %v869, %v870
    %v872 = vsel %vm395, %v849, 0.0
    %v873 = vadd.f32 %v871, %v872
    %v874 = vsel %vm395, %v850, 0.0
    %v875 = vadd.f32 %v873, %v874
    %v876 = vsel %vm395, %v851, 0.0
    %v877 = vadd.f32 %v875, %v876
    %v878 = vsel %vm395, %v852, 0.0
    %v879 = vadd.f32 %v877, %v878
    %v880 = vsel %vm395, %v853, 0.0
    %v881 = vadd.f32 %v879, %v880
    %v882 = vsel %vm395, %v854, 0.0
    %v883 = vadd.f32 %v881, %v882
    %v884 = vsel %vm395, %v855, 0.0
    %v885 = vadd.f32 %v883, %v884
    %v886 = vsel %vm395, %v856, 0.0
    %v887 = vadd.f32 %v885, %v886
    %v888 = vrot.slane %v887, 4
    %v889 = vadd.f32 %v887, %v888
    %v890 = vrot.slane %v889, 2
    %v891 = vadd.f32 %v889, %v890
    %v892 = vrot.slane %v891, 1
    %v893 = vadd.f32 %v891, %v892
    %v894 = vmax.f32 %v893, 1e-30
    %v895 = vrcp.pop %v894
    %v896 = vmul.f32 %v841, %v895
    %v897 = vmul.f32 %v842, %v895
    %v898 = vmul.f32 %v843, %v895
    %v899 = vmul.f32 %v844, %v895
    %v900 = vmul.f32 %v845, %v895
    %v901 = vmul.f32 %v846, %v895
    %v902 = vmul.f32 %v847, %v895
    %v903 = vmul.f32 %v848, %v895
    %v904 = vmul.f32 %v849, %v895
    %v905 = vmul.f32 %v850, %v895
    %v906 = vmul.f32 %v851, %v895
    %v907 = vmul.f32 %v852, %v895
    %v908 = vmul.f32 %v853, %v895
    %v909 = vmul.f32 %v854, %v895
    %v910 = vmul.f32 %v855, %v895
    %v911 = vmul.f32 %v856, %v895
    %913 = vset.pattern.permute.xlu0 0
    %914 = vperm.xlu0 %913, %v896
    %v915 = vpop.permute.xlu0 %914
    %918 = vset.pattern.permute.xlu0 0
    %919 = vperm.xlu0 %918, %v897
    %v920 = vpop.permute.xlu0 %919
    %923 = vset.pattern.permute.xlu0 0
    %924 = vperm.xlu0 %923, %v898
    %v925 = vpop.permute.xlu0 %924
    %928 = vset.pattern.permute.xlu0 0
    %929 = vperm.xlu0 %928, %v899
    %v930 = vpop.permute.xlu0 %929
    %933 = vset.pattern.permute.xlu0 0
    %934 = vperm.xlu0 %933, %v900
    %v935 = vpop.permute.xlu0 %934
    %938 = vset.pattern.permute.xlu0 0
    %939 = vperm.xlu0 %938, %v901
    %v940 = vpop.permute.xlu0 %939
    %943 = vset.pattern.permute.xlu0 0
    %944 = vperm.xlu0 %943, %v902
    %v945 = vpop.permute.xlu0 %944
    %948 = vset.pattern.permute.xlu0 0
    %949 = vperm.xlu0 %948, %v903
    %v950 = vpop.permute.xlu0 %949
    %953 = vset.pattern.permute.xlu0 0
    %954 = vperm.xlu0 %953, %v904
    %v955 = vpop.permute.xlu0 %954
    %958 = vset.pattern.permute.xlu0 0
    %959 = vperm.xlu0 %958, %v905
    %v960 = vpop.permute.xlu0 %959
    %963 = vset.pattern.permute.xlu0 0
    %964 = vperm.xlu0 %963, %v906
    %v965 = vpop.permute.xlu0 %964
    %968 = vset.pattern.permute.xlu0 0
    %969 = vperm.xlu0 %968, %v907
    %v970 = vpop.permute.xlu0 %969
    %973 = vset.pattern.permute.xlu0 0
    %974 = vperm.xlu0 %973, %v908
    %v975 = vpop.permute.xlu0 %974
    %978 = vset.pattern.permute.xlu0 0
    %979 = vperm.xlu0 %978, %v909
    %v980 = vpop.permute.xlu0 %979
    %983 = vset.pattern.permute.xlu0 0
    %984 = vperm.xlu0 %983, %v910
    %v985 = vpop.permute.xlu0 %984
    %988 = vset.pattern.permute.xlu0 0
    %989 = vperm.xlu0 %988, %v911
    %v990 = vpop.permute.xlu0 %989
    %v992 = vmul.f32 %v915, %v28
    %v993 = vmul.f32 %v920, %v29
    %v994 = vmul.f32 %v925, %v30
    %v995 = vmul.f32 %v930, %v31
    %v996 = vmul.f32 %v935, %v32
    %v997 = vmul.f32 %v940, %v33
    %v998 = vmul.f32 %v945, %v34
    %v999 = vmul.f32 %v950, %v35
    %v1000 = vmul.f32 %v955, %v36
    %v1001 = vmul.f32 %v960, %v37
    %v1002 = vmul.f32 %v965, %v38
    %v1003 = vmul.f32 %v970, %v39
    %v1004 = vmul.f32 %v975, %v40
    %v1005 = vmul.f32 %v980, %v41
    %v1006 = vmul.f32 %v985, %v42
    %v1007 = vmul.f32 %v990, %v43
    %v1008 = vadd.f32 %v992, %v993
    %v1009 = vadd.f32 %v1008, %v994
    %v1010 = vadd.f32 %v1009, %v995
    %v1011 = vadd.f32 %v1010, %v996
    %v1012 = vadd.f32 %v1011, %v997
    %v1013 = vadd.f32 %v1012, %v998
    %v1014 = vadd.f32 %v1013, %v999
    %v1015 = vadd.f32 %v1014, %v1000
    %v1016 = vadd.f32 %v1015, %v1001
    %v1017 = vadd.f32 %v1016, %v1002
    %v1018 = vadd.f32 %v1017, %v1003
    %v1019 = vadd.f32 %v1018, %v1004
    %v1020 = vadd.f32 %v1019, %v1005
    %v1021 = vadd.f32 %v1020, %v1006
    %v1022 = vadd.f32 %v1021, %v1007
    %v1023 = vrot.slane %v1022, 4
    %v1024 = vadd.f32 %v1022, %v1023
    %v1025 = vrot.slane %v1024, 2
    %v1026 = vadd.f32 %v1024, %v1025
    %v1027 = vrot.slane %v1026, 1
    %v1028 = vadd.f32 %v1026, %v1027
    %v1029 = vadd.f32 %v669, %v1028
    %v1031 = vlaneseq
    %v1032 = vshrl.u32 %v1031, 7
    %v1033 = vsub.s32 0, %v1032
    %v1034 = vrot.slane %v1029, %v1033
    %v1036 = vmul.f32 %v1034, %v161
    %v1037 = vmul.f32 %v1034, %v166
    %v1038 = vmul.f32 %v1034, %v171
    %v1039 = vmul.f32 %v1034, %v176
    %v1040 = vmul.f32 %v1034, %v181
    %v1041 = vmul.f32 %v1034, %v186
    %v1042 = vmul.f32 %v1034, %v191
    %v1043 = vmul.f32 %v1034, %v196
    %v1044 = vmul.f32 %v1034, %v201
    %v1045 = vmul.f32 %v1034, %v206
    %v1046 = vmul.f32 %v1034, %v211
    %v1047 = vmul.f32 %v1034, %v216
    %v1048 = vmul.f32 %v1034, %v221
    %v1049 = vmul.f32 %v1034, %v226
    %v1050 = vmul.f32 %v1034, %v231
    %v1051 = vmul.f32 %v1034, %v236
    %1052 = vadd.xlane.f32.xlu0 %v1036
    %v1053 = vpop.xlane.xlu0 %1052
    %1054 = vadd.xlane.f32.xlu0 %v1037
    %v1055 = vpop.xlane.xlu0 %1054
    %1056 = vadd.xlane.f32.xlu0 %v1038
    %v1057 = vpop.xlane.xlu0 %1056
    %1058 = vadd.xlane.f32.xlu0 %v1039
    %v1059 = vpop.xlane.xlu0 %1058
    %1060 = vadd.xlane.f32.xlu0 %v1040
    %v1061 = vpop.xlane.xlu0 %1060
    %1062 = vadd.xlane.f32.xlu0 %v1041
    %v1063 = vpop.xlane.xlu0 %1062
    %1064 = vadd.xlane.f32.xlu0 %v1042
    %v1065 = vpop.xlane.xlu0 %1064
    %1066 = vadd.xlane.f32.xlu0 %v1043
    %v1067 = vpop.xlane.xlu0 %1066
    %1068 = vadd.xlane.f32.xlu0 %v1044
    %v1069 = vpop.xlane.xlu0 %1068
    %1070 = vadd.xlane.f32.xlu0 %v1045
    %v1071 = vpop.xlane.xlu0 %1070
    %1072 = vadd.xlane.f32.xlu0 %v1046
    %v1073 = vpop.xlane.xlu0 %1072
    %1074 = vadd.xlane.f32.xlu0 %v1047
    %v1075 = vpop.xlane.xlu0 %1074
    %1076 = vadd.xlane.f32.xlu0 %v1048
    %v1077 = vpop.xlane.xlu0 %1076
    %1078 = vadd.xlane.f32.xlu0 %v1049
    %v1079 = vpop.xlane.xlu0 %1078
    %1080 = vadd.xlane.f32.xlu0 %v1050
    %v1081 = vpop.xlane.xlu0 %1080
    %1082 = vadd.xlane.f32.xlu0 %v1051
    %v1083 = vpop.xlane.xlu0 %1082
    %v1084 = vadd.f32 %v1053, %v262
    %v1085 = vadd.f32 %v1055, %v264
    %v1086 = vadd.f32 %v1057, %v266
    %v1087 = vadd.f32 %v1059, %v268
    %v1088 = vadd.f32 %v1061, %v270
    %v1089 = vadd.f32 %v1063, %v272
    %v1090 = vadd.f32 %v1065, %v274
    %v1091 = vadd.f32 %v1067, %v276
    %v1092 = vadd.f32 %v1069, %v278
    %v1093 = vadd.f32 %v1071, %v280
    %v1094 = vadd.f32 %v1073, %v282
    %v1095 = vadd.f32 %v1075, %v284
    %v1096 = vadd.f32 %v1077, %v286
    %v1097 = vadd.f32 %v1079, %v288
    %v1098 = vadd.f32 %v1081, %v290
    %v1099 = vadd.f32 %v1083, %v292
    %v1100 = vsel %vm363, %v1084, -1e+30
    %v1101 = vsel %vm364, %v1085, -1e+30
    %v1102 = vsel %vm365, %v1086, -1e+30
    %v1103 = vsel %vm366, %v1087, -1e+30
    %v1104 = vsel %vm367, %v1088, -1e+30
    %v1105 = vsel %vm368, %v1089, -1e+30
    %v1106 = vsel %vm369, %v1090, -1e+30
    %v1107 = vsel %vm370, %v1091, -1e+30
    %v1108 = vsel %vm371, %v1092, -1e+30
    %v1109 = vsel %vm372, %v1093, -1e+30
    %v1110 = vsel %vm373, %v1094, -1e+30
    %v1111 = vsel %vm374, %v1095, -1e+30
    %v1112 = vsel %vm375, %v1096, -1e+30
    %v1113 = vsel %vm376, %v1097, -1e+30
    %v1114 = vsel %vm377, %v1098, -1e+30
    %v1115 = vsel %vm378, %v1099, -1e+30
    %v1116 = vsel %vm395, %v1100, -inf
    %v1117 = vsel %vm395, %v1101, -inf
    %v1118 = vsel %vm395, %v1102, -inf
    %v1119 = vsel %vm395, %v1103, -inf
    %v1120 = vsel %vm395, %v1104, -inf
    %v1121 = vmax.f32 %v1116, %v1120
    %v1122 = vsel %vm395, %v1105, -inf
    %v1123 = vmax.f32 %v1117, %v1122
    %v1124 = vsel %vm395, %v1106, -inf
    %v1125 = vmax.f32 %v1118, %v1124
    %v1126 = vsel %vm395, %v1107, -inf
    %v1127 = vmax.f32 %v1119, %v1126
    %v1128 = vsel %vm395, %v1108, -inf
    %v1129 = vmax.f32 %v1121, %v1128
    %v1130 = vsel %vm395, %v1109, -inf
    %v1131 = vmax.f32 %v1123, %v1130
    %v1132 = vsel %vm395, %v1110, -inf
    %v1133 = vmax.f32 %v1125, %v1132
    %v1134 = vsel %vm395, %v1111, -inf
    %v1135 = vmax.f32 %v1127, %v1134
    %v1136 = vsel %vm395, %v1112, -inf
    %v1137 = vmax.f32 %v1129, %v1136
    %v1138 = vsel %vm395, %v1113, -inf
    %v1139 = vmax.f32 %v1131, %v1138
    %v1140 = vsel %vm395, %v1114, -inf
    %v1141 = vmax.f32 %v1133, %v1140
    %v1142 = vsel %vm395, %v1115, -inf
    %v1143 = vmax.f32 %v1135, %v1142
    %v1144 = vmax.f32 %v1137, %v1139
    %v1145 = vmax.f32 %v1141, %v1143
    %v1146 = vmax.f32 %v1144, %v1145
    %v1147 = vrot.slane %v1146, 4
    %v1148 = vmax.f32 %v1146, %v1147
    %v1149 = vrot.slane %v1148, 2
    %v1150 = vmax.f32 %v1148, %v1149
    %v1151 = vrot.slane %v1150, 1
    %v1152 = vmax.f32 %v1150, %v1151
    %v1153 = vsub.f32 %v1100, %v1152
    %v1154 = vsub.f32 %v1101, %v1152
    %v1155 = vsub.f32 %v1102, %v1152
    %v1156 = vsub.f32 %v1103, %v1152
    %v1157 = vsub.f32 %v1104, %v1152
    %v1158 = vsub.f32 %v1105, %v1152
    %v1159 = vsub.f32 %v1106, %v1152
    %v1160 = vsub.f32 %v1107, %v1152
    %v1161 = vsub.f32 %v1108, %v1152
    %v1162 = vsub.f32 %v1109, %v1152
    %v1163 = vsub.f32 %v1110, %v1152
    %v1164 = vsub.f32 %v1111, %v1152
    %v1165 = vsub.f32 %v1112, %v1152
    %v1166 = vsub.f32 %v1113, %v1152
    %v1167 = vsub.f32 %v1114, %v1152
    %v1168 = vsub.f32 %v1115, %v1152
    %v1169 = vmul.f32 %v1153, 1.442695
    %v1170 = vpow.pop %v1169
    %v1171 = vmul.f32 %v1154, 1.442695
    %v1172 = vpow.pop %v1171
    %v1173 = vmul.f32 %v1155, 1.442695
    %v1174 = vpow.pop %v1173
    %v1175 = vmul.f32 %v1156, 1.442695
    %v1176 = vpow.pop %v1175
    %v1177 = vmul.f32 %v1157, 1.442695
    %v1178 = vpow.pop %v1177
    %v1179 = vmul.f32 %v1158, 1.442695
    %v1180 = vpow.pop %v1179
    %v1181 = vmul.f32 %v1159, 1.442695
    %v1182 = vpow.pop %v1181
    %v1183 = vmul.f32 %v1160, 1.442695
    %v1184 = vpow.pop %v1183
    %v1185 = vmul.f32 %v1161, 1.442695
    %v1186 = vpow.pop %v1185
    %v1187 = vmul.f32 %v1162, 1.442695
    %v1188 = vpow.pop %v1187
    %v1189 = vmul.f32 %v1163, 1.442695
    %v1190 = vpow.pop %v1189
    %v1191 = vmul.f32 %v1164, 1.442695
    %v1192 = vpow.pop %v1191
    %v1193 = vmul.f32 %v1165, 1.442695
    %v1194 = vpow.pop %v1193
    %v1195 = vmul.f32 %v1166, 1.442695
    %v1196 = vpow.pop %v1195
    %v1197 = vmul.f32 %v1167, 1.442695
    %v1198 = vpow.pop %v1197
    %v1199 = vmul.f32 %v1168, 1.442695
    %v1200 = vpow.pop %v1199
    %v1201 = vmul.f32 %v1170, %v44
    %v1202 = vmul.f32 %v1172, %v45
    %v1203 = vmul.f32 %v1174, %v46
    %v1204 = vmul.f32 %v1176, %v47
    %v1205 = vmul.f32 %v1178, %v48
    %v1206 = vmul.f32 %v1180, %v49
    %v1207 = vmul.f32 %v1182, %v50
    %v1208 = vmul.f32 %v1184, %v51
    %v1209 = vmul.f32 %v1186, %v52
    %v1210 = vmul.f32 %v1188, %v53
    %v1211 = vmul.f32 %v1190, %v54
    %v1212 = vmul.f32 %v1192, %v55
    %v1213 = vmul.f32 %v1194, %v56
    %v1214 = vmul.f32 %v1196, %v57
    %v1215 = vmul.f32 %v1198, %v58
    %v1216 = vmul.f32 %v1200, %v59
    %v1217 = vsel %vm395, %v1201, 0.0
    %v1218 = vsel %vm395, %v1202, 0.0
    %v1219 = vadd.f32 %v1217, %v1218
    %v1220 = vsel %vm395, %v1203, 0.0
    %v1221 = vadd.f32 %v1219, %v1220
    %v1222 = vsel %vm395, %v1204, 0.0
    %v1223 = vadd.f32 %v1221, %v1222
    %v1224 = vsel %vm395, %v1205, 0.0
    %v1225 = vadd.f32 %v1223, %v1224
    %v1226 = vsel %vm395, %v1206, 0.0
    %v1227 = vadd.f32 %v1225, %v1226
    %v1228 = vsel %vm395, %v1207, 0.0
    %v1229 = vadd.f32 %v1227, %v1228
    %v1230 = vsel %vm395, %v1208, 0.0
    %v1231 = vadd.f32 %v1229, %v1230
    %v1232 = vsel %vm395, %v1209, 0.0
    %v1233 = vadd.f32 %v1231, %v1232
    %v1234 = vsel %vm395, %v1210, 0.0
    %v1235 = vadd.f32 %v1233, %v1234
    %v1236 = vsel %vm395, %v1211, 0.0
    %v1237 = vadd.f32 %v1235, %v1236
    %v1238 = vsel %vm395, %v1212, 0.0
    %v1239 = vadd.f32 %v1237, %v1238
    %v1240 = vsel %vm395, %v1213, 0.0
    %v1241 = vadd.f32 %v1239, %v1240
    %v1242 = vsel %vm395, %v1214, 0.0
    %v1243 = vadd.f32 %v1241, %v1242
    %v1244 = vsel %vm395, %v1215, 0.0
    %v1245 = vadd.f32 %v1243, %v1244
    %v1246 = vsel %vm395, %v1216, 0.0
    %v1247 = vadd.f32 %v1245, %v1246
    %v1248 = vrot.slane %v1247, 4
    %v1249 = vadd.f32 %v1247, %v1248
    %v1250 = vrot.slane %v1249, 2
    %v1251 = vadd.f32 %v1249, %v1250
    %v1252 = vrot.slane %v1251, 1
    %v1253 = vadd.f32 %v1251, %v1252
    %v1254 = vmax.f32 %v1253, 1e-30
    %v1255 = vrcp.pop %v1254
    %v1256 = vmul.f32 %v1201, %v1255
    %v1257 = vmul.f32 %v1202, %v1255
    %v1258 = vmul.f32 %v1203, %v1255
    %v1259 = vmul.f32 %v1204, %v1255
    %v1260 = vmul.f32 %v1205, %v1255
    %v1261 = vmul.f32 %v1206, %v1255
    %v1262 = vmul.f32 %v1207, %v1255
    %v1263 = vmul.f32 %v1208, %v1255
    %v1264 = vmul.f32 %v1209, %v1255
    %v1265 = vmul.f32 %v1210, %v1255
    %v1266 = vmul.f32 %v1211, %v1255
    %v1267 = vmul.f32 %v1212, %v1255
    %v1268 = vmul.f32 %v1213, %v1255
    %v1269 = vmul.f32 %v1214, %v1255
    %v1270 = vmul.f32 %v1215, %v1255
    %v1271 = vmul.f32 %v1216, %v1255
    %1273 = vset.pattern.permute.xlu0 0
    %1274 = vperm.xlu0 %1273, %v1256
    %v1275 = vpop.permute.xlu0 %1274
    %1278 = vset.pattern.permute.xlu0 0
    %1279 = vperm.xlu0 %1278, %v1257
    %v1280 = vpop.permute.xlu0 %1279
    %1283 = vset.pattern.permute.xlu0 0
    %1284 = vperm.xlu0 %1283, %v1258
    %v1285 = vpop.permute.xlu0 %1284
    %1288 = vset.pattern.permute.xlu0 0
    %1289 = vperm.xlu0 %1288, %v1259
    %v1290 = vpop.permute.xlu0 %1289
    %1293 = vset.pattern.permute.xlu0 0
    %1294 = vperm.xlu0 %1293, %v1260
    %v1295 = vpop.permute.xlu0 %1294
    %1298 = vset.pattern.permute.xlu0 0
    %1299 = vperm.xlu0 %1298, %v1261
    %v1300 = vpop.permute.xlu0 %1299
    %1303 = vset.pattern.permute.xlu0 0
    %1304 = vperm.xlu0 %1303, %v1262
    %v1305 = vpop.permute.xlu0 %1304
    %1308 = vset.pattern.permute.xlu0 0
    %1309 = vperm.xlu0 %1308, %v1263
    %v1310 = vpop.permute.xlu0 %1309
    %1313 = vset.pattern.permute.xlu0 0
    %1314 = vperm.xlu0 %1313, %v1264
    %v1315 = vpop.permute.xlu0 %1314
    %1318 = vset.pattern.permute.xlu0 0
    %1319 = vperm.xlu0 %1318, %v1265
    %v1320 = vpop.permute.xlu0 %1319
    %1323 = vset.pattern.permute.xlu0 0
    %1324 = vperm.xlu0 %1323, %v1266
    %v1325 = vpop.permute.xlu0 %1324
    %1328 = vset.pattern.permute.xlu0 0
    %1329 = vperm.xlu0 %1328, %v1267
    %v1330 = vpop.permute.xlu0 %1329
    %1333 = vset.pattern.permute.xlu0 0
    %1334 = vperm.xlu0 %1333, %v1268
    %v1335 = vpop.permute.xlu0 %1334
    %1338 = vset.pattern.permute.xlu0 0
    %1339 = vperm.xlu0 %1338, %v1269
    %v1340 = vpop.permute.xlu0 %1339
    %1343 = vset.pattern.permute.xlu0 0
    %1344 = vperm.xlu0 %1343, %v1270
    %v1345 = vpop.permute.xlu0 %1344
    %1348 = vset.pattern.permute.xlu0 0
    %1349 = vperm.xlu0 %1348, %v1271
    %v1350 = vpop.permute.xlu0 %1349
    %v1352 = vmul.f32 %v1275, %v28
    %v1353 = vmul.f32 %v1280, %v29
    %v1354 = vmul.f32 %v1285, %v30
    %v1355 = vmul.f32 %v1290, %v31
    %v1356 = vmul.f32 %v1295, %v32
    %v1357 = vmul.f32 %v1300, %v33
    %v1358 = vmul.f32 %v1305, %v34
    %v1359 = vmul.f32 %v1310, %v35
    %v1360 = vmul.f32 %v1315, %v36
    %v1361 = vmul.f32 %v1320, %v37
    %v1362 = vmul.f32 %v1325, %v38
    %v1363 = vmul.f32 %v1330, %v39
    %v1364 = vmul.f32 %v1335, %v40
    %v1365 = vmul.f32 %v1340, %v41
    %v1366 = vmul.f32 %v1345, %v42
    %v1367 = vmul.f32 %v1350, %v43
    %v1368 = vadd.f32 %v1352, %v1353
    %v1369 = vadd.f32 %v1368, %v1354
    %v1370 = vadd.f32 %v1369, %v1355
    %v1371 = vadd.f32 %v1370, %v1356
    %v1372 = vadd.f32 %v1371, %v1357
    %v1373 = vadd.f32 %v1372, %v1358
    %v1374 = vadd.f32 %v1373, %v1359
    %v1375 = vadd.f32 %v1374, %v1360
    %v1376 = vadd.f32 %v1375, %v1361
    %v1377 = vadd.f32 %v1376, %v1362
    %v1378 = vadd.f32 %v1377, %v1363
    %v1379 = vadd.f32 %v1378, %v1364
    %v1380 = vadd.f32 %v1379, %v1365
    %v1381 = vadd.f32 %v1380, %v1366
    %v1382 = vadd.f32 %v1381, %v1367
    %v1383 = vrot.slane %v1382, 4
    %v1384 = vadd.f32 %v1382, %v1383
    %v1385 = vrot.slane %v1384, 2
    %v1386 = vadd.f32 %v1384, %v1385
    %v1387 = vrot.slane %v1386, 1
    %v1388 = vadd.f32 %v1386, %v1387
    %v1389 = vadd.f32 %v1029, %v1388
    %1390 = vmatprep.subr.mxu0 0.0
    %1391 = vmatpush1.msra.mxu0 %v92
    %1392 = vmatprep.subr.mxu0 0.0
    %1393 = vmatpush1.msra.mxu0 %v91
    %1394 = vmatprep.subr.mxu0 0.0
    %1395 = vmatpush1.msra.mxu0 %v90
    %1396 = vmatprep.subr.mxu0 0.0
    %1397 = vmatpush1.msra.mxu0 %v89
    %1398 = vmatprep.subr.mxu0 0.0
    %1399 = vmatpush1.msra.mxu0 %v88
    %1400 = vmatprep.subr.mxu0 0.0
    %1401 = vmatpush1.msra.mxu0 %v87
    %1402 = vmatprep.subr.mxu0 0.0
    %1403 = vmatpush1.msra.mxu0 %v86
    %1404 = vmatprep.subr.mxu0 0.0
    %1405 = vmatpush1.msra.mxu0 %v85
    %1406 = vmatprep.subr.mxu0 0.0
    %1407 = vmatpush1.msra.mxu0 %v84
    %1408 = vmatprep.subr.mxu0 0.0
    %1409 = vmatpush1.msra.mxu0 %v83
    %1410 = vmatprep.subr.mxu0 0.0
    %1411 = vmatpush1.msra.mxu0 %v82
    %1412 = vmatprep.subr.mxu0 0.0
    %1413 = vmatpush1.msra.mxu0 %v81
    %1414 = vmatprep.subr.mxu0 0.0
    %1415 = vmatpush1.msra.mxu0 %v80
    %1416 = vmatprep.subr.mxu0 0.0
    %1417 = vmatpush1.msra.mxu0 %v79
    %1418 = vmatprep.subr.mxu0 0.0
    %1419 = vmatpush1.msra.mxu0 %v78
    %1420 = vmatprep.subr.mxu0 0.0
    %1421 = vmatpush1.msra.mxu0 %v77
    %1422 = vmatprep.subr.mxu0 0.0
    %1423 = vmatpush2.msra.mxu0 0.0
    %1424 = vmatprep.subr.mxu0 0.0
    %1425 = vmatpush2.msra.mxu0 0.0
    %1426 = vmatprep.subr.mxu0 0.0
    %1427 = vmatpush2.msra.mxu0 0.0
    %1428 = vmatprep.subr.mxu0 0.0
    %1429 = vmatpush2.msra.mxu0 0.0
    %1430 = vmatprep.subr.mxu0 0.0
    %1431 = vmatpush2.msra.mxu0 0.0
    %1432 = vmatprep.subr.mxu0 0.0
    %1433 = vmatpush2.msra.mxu0 0.0
    %1434 = vmatprep.subr.mxu0 0.0
    %1435 = vmatpush2.msra.mxu0 0.0
    %1436 = vmatprep.subr.mxu0 0.0
    %1437 = vmatpush2.msra.mxu0 0.0
    %1438 = vmatprep.subr.mxu0 0.0
    %1439 = vmatpush2.msra.mxu0 0.0
    %1440 = vmatprep.subr.mxu0 0.0
    %1441 = vmatpush2.msra.mxu0 0.0
    %1442 = vmatprep.subr.mxu0 0.0
    %1443 = vmatpush2.msra.mxu0 0.0
    %1444 = vmatprep.subr.mxu0 0.0
    %1445 = vmatpush2.msra.mxu0 0.0
    %1446 = vmatprep.subr.mxu0 0.0
    %1447 = vmatpush2.msra.mxu0 0.0
    %1448 = vmatprep.subr.mxu0 0.0
    %1449 = vmatpush2.msra.mxu0 0.0
    %1450 = vmatprep.subr.mxu0 0.0
    %1451 = vmatpush2.msra.mxu0 0.0
    %1452 = vmatprep.subr.mxu0 0.0
    %1453 = vmatpush2.msra.mxu0 0.0
    %1454 = vmatprep.mubr.f32.mxu0 0.0
    %1455 = vmatmul.mubr.f32.gmra.mxu0 %v1389
    %v1456 = vpop.f32.mrf.mxu0
    %v1457 = vadd.f32 0.0, %v1456
    %v1458 = vpop.f32.mrf.mxu0
    %1459 = vdwg.mxu0
    %vm1460 = vcmp.gt.f32.partialorder %v93, 0.0
    %v1461 = vsel %vm1460, %v1457, -1e+30
    %vm1462 = vcmask 1040384
    %v1463 = vsel %vm1462, %v1461, -inf
    %1464 = vmax.xlane.f32.xlu0 %v1463
    %v1465 = vpop.xlane.xlu0 %1464
    %v1466 = vsub.f32 %v1461, %v1465
    %v1467 = vmul.f32 %v1466, 1.442695
    %v1468 = vpow.pop %v1467
    %v1469 = vmul.f32 %v1468, %v93
    %v1470 = vsel %vm1462, %v1469, 0.0
    %1471 = vadd.xlane.f32.xlu0 %v1470
    %v1472 = vpop.xlane.xlu0 %1471
    %v1473 = vmax.f32 %v1472, 1e-30
    %v1474 = vrcp.pop %v1473
    %v1475 = vmul.f32 %v1469, %v1474
    %1476 = vst [vmem:[#allocation2] sm:$0x1] %v1475
    // Predicated region
    $region30: #{attn_reader_forward.1} parent=1 // pred_check
      _
    $region31: #{attn_reader_forward.1} parent=1 // pred_check_branch
      %1478 = sbr.rel (0) target = $region33
    $region32: #{attn_reader_forward.1} parent=1 // pred_region
      %s1480 = ssub.s32 16, 16
      %1481 = vsyncadd [#allocation3], %s1480
      %s1483 = sshll.u32 [#allocation2], 4
      %s1484 = int_to_ptr.vmem [resolvable:$true] %s1483
      %1486 = dma.vmem_to_hbm [thread:$0]  %s1484, 16, %s7, [#allocation3]
    $region33: #{attn_reader_forward.1} parent=1 // pred_fallthru
      _
    // Predicated region
    $region34: #{attn_reader_forward.1} parent=1 // pred_check
      _
    $region35: #{attn_reader_forward.1} parent=1 // pred_check_branch
      %1488 = sbr.rel (0) target = $region37
    $region36: #{attn_reader_forward.1} parent=1 // pred_region
      %1489 = dma.done [#allocation3], 16
    $region37: #{attn_reader_forward.1} parent=1 // pred_fallthru
      _
    %1490 = vsyncpa [#allocation3], 1

</llo_original>
